<compile_context>
chip_gen: v6e
topology: v6e:2x2x1
jax: 0.10.0
libtpu: 0.0.40
codegen_flags: <defaults>
</compile_context>

<pallas_src>
import functools

import numpy as np
import jax
import jax.numpy as jnp
from jax import lax
from jax.experimental import pallas as pl
from jax.experimental.pallas import tpu as pltpu


# ---------------------------------------------------------------------------
# In-kernel conv layer: 9 shift+mask+matmul taps, bias, ReLU (all in VMEM)
# ---------------------------------------------------------------------------
def _conv_taps_relu(x, w_ref, b_ref, m_ref, shifts):
    """Stride-1 'same' KxK conv + ReLU on a (Cin, HW) f32 tile.

    w_ref: (T, Cout, Cin) per-tap weight matrices (T = K*K).
    b_ref: (Cout, 1) bias.
    m_ref: (T, 1, HW) 0/1 validity masks (zero out wrapped/out-of-bounds taps).
    shifts: static per-tap flat source offsets (oy*W + ox).
    """
    cout = w_ref.shape[1]
    hw = x.shape[-1]
    acc = jnp.zeros((cout, hw), dtype=jnp.float32)
    for t, s in enumerate(shifts):
        # shifted[p] = x[(p + s) mod HW]; invalid (wrapped) positions are
        # zeroed by the precomputed mask, reproducing zero padding.
        src = x if s == 0 else pltpu.roll(x, shift=(-s) % hw, axis=1)
        tap = src * m_ref[t]
        acc = acc + jnp.dot(w_ref[t], tap, preferred_element_type=jnp.float32)
    return jnp.maximum(acc + b_ref[...], 0.0)


def _base_conv_kernel(x_ref, w1_ref, b1_ref, w2_ref, b2_ref, m_ref, o_ref, *, shifts):
    x = x_ref[0].astype(jnp.float32)                        # (Cin, HW)
    h = _conv_taps_relu(x, w1_ref, b1_ref, m_ref, shifts)   # conv1 + ReLU
    y = _conv_taps_relu(h, w2_ref, b2_ref, m_ref, shifts)   # conv2 + ReLU (VMEM-resident input)
    o_ref[0] = y.astype(o_ref.dtype)                        # (Cout, HW): lane-dense store


def _fused_base_conv(x_flat, w1_taps, b1, w2_taps, b2, masks, *, shifts):
    n, cin, hw = x_flat.shape
    t, cout, _ = w1_taps.shape
    kernel = functools.partial(_base_conv_kernel, shifts=shifts)
    return pl.pallas_call(
        kernel,
        out_shape=jax.ShapeDtypeStruct((n, cout, hw), x_flat.dtype),
        grid_spec=pltpu.PrefetchScalarGridSpec(
            num_scalar_prefetch=0,
            grid=(n,),                                            # one step per sample
            in_specs=[
                pl.BlockSpec((1, cin, hw), lambda i: (i, 0, 0)),      # sample (Cin, HW)
                pl.BlockSpec((t, cout, cin), lambda i: (0, 0, 0)),    # conv1 weights (resident)
                pl.BlockSpec((cout, 1), lambda i: (0, 0)),            # conv1 bias
                pl.BlockSpec((t, cout, cout), lambda i: (0, 0, 0)),   # conv2 weights (resident)
                pl.BlockSpec((cout, 1), lambda i: (0, 0)),            # conv2 bias
                pl.BlockSpec((t, 1, hw), lambda i: (0, 0, 0)),        # tap validity masks
            ],
            out_specs=pl.BlockSpec((1, cout, hw), lambda i: (i, 0, 0)),
        ),
        compiler_params=pltpu.CompilerParams(
            dimension_semantics=("parallel",)),   # batch shards across TCs on v7x
    )(x_flat, w1_taps, b1, w2_taps, b2, masks)


# ---------------------------------------------------------------------------
# Static tap masks / shifts for a stride-1 'same' KxK conv on an HxW grid
# ---------------------------------------------------------------------------
def _make_taps(h, w, k, pad):
    hw = h * w
    yy, xx = np.meshgrid(np.arange(h), np.arange(w), indexing="ij")
    yy = yy.reshape(-1)
    xx = xx.reshape(-1)
    masks = np.zeros((k * k, 1, hw), np.float32)
    shifts = []
    for ki in range(k):
        for kj in range(k):
            oy, ox = ki - pad, kj - pad
            valid = ((yy + oy >= 0) & (yy + oy < h) &
                     (xx + ox >= 0) & (xx + ox < w))
            masks[ki * k + kj, 0, :] = valid
            shifts.append(oy * w + ox)
    return jnp.asarray(masks), tuple(shifts)


# ---------------------------------------------------------------------------
# Parameters
# ---------------------------------------------------------------------------
def init_conv_params(key, cin, cout, k):
    """Mimic PyTorch Conv2d default init (uniform +/- 1/sqrt(fan_in)); OIHW."""
    fan_in = cin * k * k
    bound = 1.0 / np.sqrt(fan_in)
    kw, kb = jax.random.split(key)
    w_oihw = jax.random.uniform(kw, (cout, cin, k, k), jnp.float32, -bound, bound)
    b = jax.random.uniform(kb, (cout,), jnp.float32, -bound, bound)
    return w_oihw, b


def pack_conv_params(w_oihw, b):
    """OIHW -> (K*K, Cout, Cin) per-tap matrices + (Cout, 1) bias (done once at init)."""
    cout, cin, k, _ = w_oihw.shape
    w_taps = jnp.transpose(w_oihw, (2, 3, 0, 1)).reshape(k * k, cout, cin)
    return w_taps, b.reshape(cout, 1)


# ---------------------------------------------------------------------------
# Forward
# ---------------------------------------------------------------------------
def base_conv_forward(x_nchw, kernel_params, kernel_size, padding_arg, stride_arg):
    # Reproduce the positional-argument swap of the PyTorch module:
    eff_stride = padding_arg
    eff_pad = stride_arg
    assert eff_stride == 1 and 2 * eff_pad == kernel_size - 1, (
        "fused kernel handles stride-1 'same' convs (what the reference config implies)")
    # TODO(synk): general stride/padding would need a separate output-grid index map.
    (w1_taps, b1), (w2_taps, b2) = kernel_params
    n, cin, h, w = x_nchw.shape
    masks, shifts = _make_taps(h, w, kernel_size, eff_pad)
    x_flat = x_nchw.reshape(n, cin, h * w)          # free reshape, no transpose
    out_flat = _fused_base_conv(x_flat, w1_taps, b1, w2_taps, b2, masks, shifts=shifts)
    return out_flat.reshape(n, w1_taps.shape[1], h, w)


# ---------------------------------------------------------------------------
# Reference (plain JAX) for correctness checking
# ---------------------------------------------------------------------------
def _ref_forward(x_nchw, raw_params, padding_arg, stride_arg):
    eff_stride = padding_arg
    eff_pad = stride_arg
    x = x_nchw
    for w_oihw, b in raw_params:
        x = lax.conv_general_dilated(
            x, w_oihw, (eff_stride, eff_stride), [(eff_pad, eff_pad)] * 2,
            dimension_numbers=("NCHW", "OIHW", "NCHW"))
        x = jnp.maximum(x + b[None, :, None, None], 0.0)
    return x


if __name__ == "__main__":
    batch, in_channels, out_channels = 2, 4, 8
    spatial, kernel_size, padding, stride = 16, 3, 1, 1

    key = jax.random.PRNGKey(0)
    kx, k1, k2 = jax.random.split(key, 3)
    x = jax.random.normal(kx, (batch, in_channels, spatial, spatial), jnp.float32)
    raw_params = (
        init_conv_params(k1, in_channels, out_channels, kernel_size),
        init_conv_params(k2, out_channels, out_channels, kernel_size),
    )
    kernel_params = tuple(pack_conv_params(w, b) for w, b in raw_params)

    fwd = jax.jit(functools.partial(
        base_conv_forward,
        kernel_params=kernel_params,
        kernel_size=kernel_size,
        padding_arg=padding,
        stride_arg=stride))
    out = jax.block_until_ready(fwd(x))

    ref = jax.block_until_ready(_ref_forward(x, raw_params, padding, stride))
    assert out.shape == ref.shape == (batch, out_channels, spatial, spatial)
    assert jnp.allclose(out, ref, atol=1e-4, rtol=1e-4), "mismatch vs reference"

    print("KERNEL_OK")
</pallas_src>

<mosaic_0001>
module attributes {stable_mosaic.version = 11 : i64} {
  func.func @_base_conv_kernel(%arg0: i32, %arg1: memref<1x4x256xf32, #tpu.memory_space<vmem>>, %arg2: memref<9x8x4xf32, #tpu.memory_space<vmem>>, %arg3: memref<8x1xf32, #tpu.memory_space<vmem>>, %arg4: memref<9x8x8xf32, #tpu.memory_space<vmem>>, %arg5: memref<8x1xf32, #tpu.memory_space<vmem>>, %arg6: memref<9x1x256xf32, #tpu.memory_space<vmem>>, %arg7: memref<1x8x256xf32, #tpu.memory_space<vmem>>) attributes {dimension_semantics = [#tpu.dimension_semantics<parallel>], iteration_bounds = array<i64: 2>, scalar_prefetch = 0 : i64, scratch_operands = 0 : i64, tpu.core_type = #tpu.core_type<tc>, window_params = [{transform_indices = @transform_0, window_bounds = array<i64: 1, 4, 256>}, {pipeline_mode = #tpu.pipeline_mode<synchronous>, transform_indices = @transform_1, window_bounds = array<i64: 9, 8, 4>}, {pipeline_mode = #tpu.pipeline_mode<synchronous>, transform_indices = @transform_2, window_bounds = array<i64: 8, 1>}, {pipeline_mode = #tpu.pipeline_mode<synchronous>, transform_indices = @transform_3, window_bounds = array<i64: 9, 8, 8>}, {pipeline_mode = #tpu.pipeline_mode<synchronous>, transform_indices = @transform_4, window_bounds = array<i64: 8, 1>}, {pipeline_mode = #tpu.pipeline_mode<synchronous>, transform_indices = @transform_5, window_bounds = array<i64: 9, 1, 256>}, {transform_indices = @transform_6, window_bounds = array<i64: 1, 8, 256>}]} {
    %c0 = arith.constant 0 : index
    %c0_0 = arith.constant 0 : index
    %c0_1 = arith.constant 0 : index
    %0 = vector.load %arg1[%c0, %c0_0, %c0_1] : memref<1x4x256xf32, #tpu.memory_space<vmem>>, vector<1x4x256xf32>
    %1 = vector.shape_cast %0 : vector<1x4x256xf32> to vector<4x256xf32>
    %cst = arith.constant 0.000000e+00 : f32
    %2 = vector.broadcast %cst : f32 to vector<8x256xf32>
    %c17_i32 = arith.constant 17 : i32
    %3 = tpu.dynamic_rotate %1 by %c17_i32 dim 1 : vector<4x256xf32>, i32 -> vector<4x256xf32>
    %c0_2 = arith.constant 0 : index
    %c0_3 = arith.constant 0 : index
    %c0_4 = arith.constant 0 : index
    %4 = vector.load %arg6[%c0_2, %c0_3, %c0_4] : memref<9x1x256xf32, #tpu.memory_space<vmem>>, vector<1x1x256xf32>
    %5 = vector.shape_cast %4 : vector<1x1x256xf32> to vector<1x256xf32>
    %6 = vector.broadcast %5 : vector<1x256xf32> to vector<4x256xf32>
    %7 = arith.mulf %3, %6 : vector<4x256xf32>
    %c0_5 = arith.constant 0 : index
    %c0_6 = arith.constant 0 : index
    %c0_7 = arith.constant 0 : index
    %8 = vector.load %arg2[%c0_5, %c0_6, %c0_7] : memref<9x8x4xf32, #tpu.memory_space<vmem>>, vector<1x8x4xf32>
    %9 = vector.shape_cast %8 : vector<1x8x4xf32> to vector<8x4xf32>
    %cst_8 = arith.constant dense<0.000000e+00> : vector<8x256xf32>
    %10 = tpu.matmul %9, %7, %cst_8 {dimension_numbers = #tpu.dot_dimension_numbers<[1], [0], [0], [1], [0, 0, 1, 1], [], []>} : vector<8x4xf32>, vector<4x256xf32>, vector<8x256xf32> -> vector<8x256xf32>
    %11 = arith.addf %2, %10 : vector<8x256xf32>
    %c16_i32 = arith.constant 16 : i32
    %12 = tpu.dynamic_rotate %1 by %c16_i32 dim 1 : vector<4x256xf32>, i32 -> vector<4x256xf32>
    %c1 = arith.constant 1 : index
    %c0_9 = arith.constant 0 : index
    %c0_10 = arith.constant 0 : index
    %13 = vector.load %arg6[%c1, %c0_9, %c0_10] : memref<9x1x256xf32, #tpu.memory_space<vmem>>, vector<1x1x256xf32>
    %14 = vector.shape_cast %13 : vector<1x1x256xf32> to vector<1x256xf32>
    %15 = vector.broadcast %14 : vector<1x256xf32> to vector<4x256xf32>
    %16 = arith.mulf %12, %15 : vector<4x256xf32>
    %c1_11 = arith.constant 1 : index
    %c0_12 = arith.constant 0 : index
    %c0_13 = arith.constant 0 : index
    %17 = vector.load %arg2[%c1_11, %c0_12, %c0_13] : memref<9x8x4xf32, #tpu.memory_space<vmem>>, vector<1x8x4xf32>
    %18 = vector.shape_cast %17 : vector<1x8x4xf32> to vector<8x4xf32>
    %cst_14 = arith.constant dense<0.000000e+00> : vector<8x256xf32>
    %19 = tpu.matmul %18, %16, %cst_14 {dimension_numbers = #tpu.dot_dimension_numbers<[1], [0], [0], [1], [0, 0, 1, 1], [], []>} : vector<8x4xf32>, vector<4x256xf32>, vector<8x256xf32> -> vector<8x256xf32>
    %20 = arith.addf %11, %19 : vector<8x256xf32>
    %c15_i32 = arith.constant 15 : i32
    %21 = tpu.dynamic_rotate %1 by %c15_i32 dim 1 : vector<4x256xf32>, i32 -> vector<4x256xf32>
    %c2 = arith.constant 2 : index
    %c0_15 = arith.constant 0 : index
    %c0_16 = arith.constant 0 : index
    %22 = vector.load %arg6[%c2, %c0_15, %c0_16] : memref<9x1x256xf32, #tpu.memory_space<vmem>>, vector<1x1x256xf32>
    %23 = vector.shape_cast %22 : vector<1x1x256xf32> to vector<1x256xf32>
    %24 = vector.broadcast %23 : vector<1x256xf32> to vector<4x256xf32>
    %25 = arith.mulf %21, %24 : vector<4x256xf32>
    %c2_17 = arith.constant 2 : index
    %c0_18 = arith.constant 0 : index
    %c0_19 = arith.constant 0 : index
    %26 = vector.load %arg2[%c2_17, %c0_18, %c0_19] : memref<9x8x4xf32, #tpu.memory_space<vmem>>, vector<1x8x4xf32>
    %27 = vector.shape_cast %26 : vector<1x8x4xf32> to vector<8x4xf32>
    %cst_20 = arith.constant dense<0.000000e+00> : vector<8x256xf32>
    %28 = tpu.matmul %27, %25, %cst_20 {dimension_numbers = #tpu.dot_dimension_numbers<[1], [0], [0], [1], [0, 0, 1, 1], [], []>} : vector<8x4xf32>, vector<4x256xf32>, vector<8x256xf32> -> vector<8x256xf32>
    %29 = arith.addf %20, %28 : vector<8x256xf32>
    %c1_i32 = arith.constant 1 : i32
    %30 = tpu.dynamic_rotate %1 by %c1_i32 dim 1 : vector<4x256xf32>, i32 -> vector<4x256xf32>
    %c3 = arith.constant 3 : index
    %c0_21 = arith.constant 0 : index
    %c0_22 = arith.constant 0 : index
    %31 = vector.load %arg6[%c3, %c0_21, %c0_22] : memref<9x1x256xf32, #tpu.memory_space<vmem>>, vector<1x1x256xf32>
    %32 = vector.shape_cast %31 : vector<1x1x256xf32> to vector<1x256xf32>
    %33 = vector.broadcast %32 : vector<1x256xf32> to vector<4x256xf32>
    %34 = arith.mulf %30, %33 : vector<4x256xf32>
    %c3_23 = arith.constant 3 : index
    %c0_24 = arith.constant 0 : index
    %c0_25 = arith.constant 0 : index
    %35 = vector.load %arg2[%c3_23, %c0_24, %c0_25] : memref<9x8x4xf32, #tpu.memory_space<vmem>>, vector<1x8x4xf32>
    %36 = vector.shape_cast %35 : vector<1x8x4xf32> to vector<8x4xf32>
    %cst_26 = arith.constant dense<0.000000e+00> : vector<8x256xf32>
    %37 = tpu.matmul %36, %34, %cst_26 {dimension_numbers = #tpu.dot_dimension_numbers<[1], [0], [0], [1], [0, 0, 1, 1], [], []>} : vector<8x4xf32>, vector<4x256xf32>, vector<8x256xf32> -> vector<8x256xf32>
    %38 = arith.addf %29, %37 : vector<8x256xf32>
    %c4 = arith.constant 4 : index
    %c0_27 = arith.constant 0 : index
    %c0_28 = arith.constant 0 : index
    %39 = vector.load %arg6[%c4, %c0_27, %c0_28] : memref<9x1x256xf32, #tpu.memory_space<vmem>>, vector<1x1x256xf32>
    %40 = vector.shape_cast %39 : vector<1x1x256xf32> to vector<1x256xf32>
    %41 = vector.broadcast %40 : vector<1x256xf32> to vector<4x256xf32>
    %42 = arith.mulf %1, %41 : vector<4x256xf32>
    %c4_29 = arith.constant 4 : index
    %c0_30 = arith.constant 0 : index
    %c0_31 = arith.constant 0 : index
    %43 = vector.load %arg2[%c4_29, %c0_30, %c0_31] : memref<9x8x4xf32, #tpu.memory_space<vmem>>, vector<1x8x4xf32>
    %44 = vector.shape_cast %43 : vector<1x8x4xf32> to vector<8x4xf32>
    %cst_32 = arith.constant dense<0.000000e+00> : vector<8x256xf32>
    %45 = tpu.matmul %44, %42, %cst_32 {dimension_numbers = #tpu.dot_dimension_numbers<[1], [0], [0], [1], [0, 0, 1, 1], [], []>} : vector<8x4xf32>, vector<4x256xf32>, vector<8x256xf32> -> vector<8x256xf32>
    %46 = arith.addf %38, %45 : vector<8x256xf32>
    %c255_i32 = arith.constant 255 : i32
    %47 = tpu.dynamic_rotate %1 by %c255_i32 dim 1 : vector<4x256xf32>, i32 -> vector<4x256xf32>
    %c5 = arith.constant 5 : index
    %c0_33 = arith.constant 0 : index
    %c0_34 = arith.constant 0 : index
    %48 = vector.load %arg6[%c5, %c0_33, %c0_34] : memref<9x1x256xf32, #tpu.memory_space<vmem>>, vector<1x1x256xf32>
    %49 = vector.shape_cast %48 : vector<1x1x256xf32> to vector<1x256xf32>
    %50 = vector.broadcast %49 : vector<1x256xf32> to vector<4x256xf32>
    %51 = arith.mulf %47, %50 : vector<4x256xf32>
    %c5_35 = arith.constant 5 : index
    %c0_36 = arith.constant 0 : index
    %c0_37 = arith.constant 0 : index
    %52 = vector.load %arg2[%c5_35, %c0_36, %c0_37] : memref<9x8x4xf32, #tpu.memory_space<vmem>>, vector<1x8x4xf32>
    %53 = vector.shape_cast %52 : vector<1x8x4xf32> to vector<8x4xf32>
    %cst_38 = arith.constant dense<0.000000e+00> : vector<8x256xf32>
    %54 = tpu.matmul %53, %51, %cst_38 {dimension_numbers = #tpu.dot_dimension_numbers<[1], [0], [0], [1], [0, 0, 1, 1], [], []>} : vector<8x4xf32>, vector<4x256xf32>, vector<8x256xf32> -> vector<8x256xf32>
    %55 = arith.addf %46, %54 : vector<8x256xf32>
    %c241_i32 = arith.constant 241 : i32
    %56 = tpu.dynamic_rotate %1 by %c241_i32 dim 1 : vector<4x256xf32>, i32 -> vector<4x256xf32>
    %c6 = arith.constant 6 : index
    %c0_39 = arith.constant 0 : index
    %c0_40 = arith.constant 0 : index
    %57 = vector.load %arg6[%c6, %c0_39, %c0_40] : memref<9x1x256xf32, #tpu.memory_space<vmem>>, vector<1x1x256xf32>
    %58 = vector.shape_cast %57 : vector<1x1x256xf32> to vector<1x256xf32>
    %59 = vector.broadcast %58 : vector<1x256xf32> to vector<4x256xf32>
    %60 = arith.mulf %56, %59 : vector<4x256xf32>
    %c6_41 = arith.constant 6 : index
    %c0_42 = arith.constant 0 : index
    %c0_43 = arith.constant 0 : index
    %61 = vector.load %arg2[%c6_41, %c0_42, %c0_43] : memref<9x8x4xf32, #tpu.memory_space<vmem>>, vector<1x8x4xf32>
    %62 = vector.shape_cast %61 : vector<1x8x4xf32> to vector<8x4xf32>
    %cst_44 = arith.constant dense<0.000000e+00> : vector<8x256xf32>
    %63 = tpu.matmul %62, %60, %cst_44 {dimension_numbers = #tpu.dot_dimension_numbers<[1], [0], [0], [1], [0, 0, 1, 1], [], []>} : vector<8x4xf32>, vector<4x256xf32>, vector<8x256xf32> -> vector<8x256xf32>
    %64 = arith.addf %55, %63 : vector<8x256xf32>
    %c240_i32 = arith.constant 240 : i32
    %65 = tpu.dynamic_rotate %1 by %c240_i32 dim 1 : vector<4x256xf32>, i32 -> vector<4x256xf32>
    %c7 = arith.constant 7 : index
    %c0_45 = arith.constant 0 : index
    %c0_46 = arith.constant 0 : index
    %66 = vector.load %arg6[%c7, %c0_45, %c0_46] : memref<9x1x256xf32, #tpu.memory_space<vmem>>, vector<1x1x256xf32>
    %67 = vector.shape_cast %66 : vector<1x1x256xf32> to vector<1x256xf32>
    %68 = vector.broadcast %67 : vector<1x256xf32> to vector<4x256xf32>
    %69 = arith.mulf %65, %68 : vector<4x256xf32>
    %c7_47 = arith.constant 7 : index
    %c0_48 = arith.constant 0 : index
    %c0_49 = arith.constant 0 : index
    %70 = vector.load %arg2[%c7_47, %c0_48, %c0_49] : memref<9x8x4xf32, #tpu.memory_space<vmem>>, vector<1x8x4xf32>
    %71 = vector.shape_cast %70 : vector<1x8x4xf32> to vector<8x4xf32>
    %cst_50 = arith.constant dense<0.000000e+00> : vector<8x256xf32>
    %72 = tpu.matmul %71, %69, %cst_50 {dimension_numbers = #tpu.dot_dimension_numbers<[1], [0], [0], [1], [0, 0, 1, 1], [], []>} : vector<8x4xf32>, vector<4x256xf32>, vector<8x256xf32> -> vector<8x256xf32>
    %73 = arith.addf %64, %72 : vector<8x256xf32>
    %c239_i32 = arith.constant 239 : i32
    %74 = tpu.dynamic_rotate %1 by %c239_i32 dim 1 : vector<4x256xf32>, i32 -> vector<4x256xf32>
    %c8 = arith.constant 8 : index
    %c0_51 = arith.constant 0 : index
    %c0_52 = arith.constant 0 : index
    %75 = vector.load %arg6[%c8, %c0_51, %c0_52] : memref<9x1x256xf32, #tpu.memory_space<vmem>>, vector<1x1x256xf32>
    %76 = vector.shape_cast %75 : vector<1x1x256xf32> to vector<1x256xf32>
    %77 = vector.broadcast %76 : vector<1x256xf32> to vector<4x256xf32>
    %78 = arith.mulf %74, %77 : vector<4x256xf32>
    %c8_53 = arith.constant 8 : index
    %c0_54 = arith.constant 0 : index
    %c0_55 = arith.constant 0 : index
    %79 = vector.load %arg2[%c8_53, %c0_54, %c0_55] : memref<9x8x4xf32, #tpu.memory_space<vmem>>, vector<1x8x4xf32>
    %80 = vector.shape_cast %79 : vector<1x8x4xf32> to vector<8x4xf32>
    %cst_56 = arith.constant dense<0.000000e+00> : vector<8x256xf32>
    %81 = tpu.matmul %80, %78, %cst_56 {dimension_numbers = #tpu.dot_dimension_numbers<[1], [0], [0], [1], [0, 0, 1, 1], [], []>} : vector<8x4xf32>, vector<4x256xf32>, vector<8x256xf32> -> vector<8x256xf32>
    %82 = arith.addf %73, %81 : vector<8x256xf32>
    %c0_57 = arith.constant 0 : index
    %c0_58 = arith.constant 0 : index
    %83 = vector.load %arg3[%c0_57, %c0_58] : memref<8x1xf32, #tpu.memory_space<vmem>>, vector<8x1xf32>
    %84 = vector.broadcast %83 : vector<8x1xf32> to vector<8x256xf32>
    %85 = arith.addf %82, %84 : vector<8x256xf32>
    %cst_59 = arith.constant 0.000000e+00 : f32
    %86 = vector.broadcast %cst_59 : f32 to vector<8x256xf32>
    %87 = arith.maximumf %85, %86 : vector<8x256xf32>
    %cst_60 = arith.constant 0.000000e+00 : f32
    %88 = vector.broadcast %cst_60 : f32 to vector<8x256xf32>
    %c17_i32_61 = arith.constant 17 : i32
    %89 = tpu.dynamic_rotate %87 by %c17_i32_61 dim 1 : vector<8x256xf32>, i32 -> vector<8x256xf32>
    %c0_62 = arith.constant 0 : index
    %c0_63 = arith.constant 0 : index
    %c0_64 = arith.constant 0 : index
    %90 = vector.load %arg6[%c0_62, %c0_63, %c0_64] : memref<9x1x256xf32, #tpu.memory_space<vmem>>, vector<1x1x256xf32>
    %91 = vector.shape_cast %90 : vector<1x1x256xf32> to vector<1x256xf32>
    %92 = vector.broadcast %91 : vector<1x256xf32> to vector<8x256xf32>
    %93 = arith.mulf %89, %92 : vector<8x256xf32>
    %c0_65 = arith.constant 0 : index
    %c0_66 = arith.constant 0 : index
    %c0_67 = arith.constant 0 : index
    %94 = vector.load %arg4[%c0_65, %c0_66, %c0_67] : memref<9x8x8xf32, #tpu.memory_space<vmem>>, vector<1x8x8xf32>
    %95 = vector.shape_cast %94 : vector<1x8x8xf32> to vector<8x8xf32>
    %cst_68 = arith.constant dense<0.000000e+00> : vector<8x256xf32>
    %96 = tpu.matmul %95, %93, %cst_68 {dimension_numbers = #tpu.dot_dimension_numbers<[1], [0], [0], [1], [0, 0, 1, 1], [], []>} : vector<8x8xf32>, vector<8x256xf32>, vector<8x256xf32> -> vector<8x256xf32>
    %97 = arith.addf %88, %96 : vector<8x256xf32>
    %c16_i32_69 = arith.constant 16 : i32
    %98 = tpu.dynamic_rotate %87 by %c16_i32_69 dim 1 : vector<8x256xf32>, i32 -> vector<8x256xf32>
    %c1_70 = arith.constant 1 : index
    %c0_71 = arith.constant 0 : index
    %c0_72 = arith.constant 0 : index
    %99 = vector.load %arg6[%c1_70, %c0_71, %c0_72] : memref<9x1x256xf32, #tpu.memory_space<vmem>>, vector<1x1x256xf32>
    %100 = vector.shape_cast %99 : vector<1x1x256xf32> to vector<1x256xf32>
    %101 = vector.broadcast %100 : vector<1x256xf32> to vector<8x256xf32>
    %102 = arith.mulf %98, %101 : vector<8x256xf32>
    %c1_73 = arith.constant 1 : index
    %c0_74 = arith.constant 0 : index
    %c0_75 = arith.constant 0 : index
    %103 = vector.load %arg4[%c1_73, %c0_74, %c0_75] : memref<9x8x8xf32, #tpu.memory_space<vmem>>, vector<1x8x8xf32>
    %104 = vector.shape_cast %103 : vector<1x8x8xf32> to vector<8x8xf32>
    %cst_76 = arith.constant dense<0.000000e+00> : vector<8x256xf32>
    %105 = tpu.matmul %104, %102, %cst_76 {dimension_numbers = #tpu.dot_dimension_numbers<[1], [0], [0], [1], [0, 0, 1, 1], [], []>} : vector<8x8xf32>, vector<8x256xf32>, vector<8x256xf32> -> vector<8x256xf32>
    %106 = arith.addf %97, %105 : vector<8x256xf32>
    %c15_i32_77 = arith.constant 15 : i32
    %107 = tpu.dynamic_rotate %87 by %c15_i32_77 dim 1 : vector<8x256xf32>, i32 -> vector<8x256xf32>
    %c2_78 = arith.constant 2 : index
    %c0_79 = arith.constant 0 : index
    %c0_80 = arith.constant 0 : index
    %108 = vector.load %arg6[%c2_78, %c0_79, %c0_80] : memref<9x1x256xf32, #tpu.memory_space<vmem>>, vector<1x1x256xf32>
    %109 = vector.shape_cast %108 : vector<1x1x256xf32> to vector<1x256xf32>
    %110 = vector.broadcast %109 : vector<1x256xf32> to vector<8x256xf32>
    %111 = arith.mulf %107, %110 : vector<8x256xf32>
    %c2_81 = arith.constant 2 : index
    %c0_82 = arith.constant 0 : index
    %c0_83 = arith.constant 0 : index
    %112 = vector.load %arg4[%c2_81, %c0_82, %c0_83] : memref<9x8x8xf32, #tpu.memory_space<vmem>>, vector<1x8x8xf32>
    %113 = vector.shape_cast %112 : vector<1x8x8xf32> to vector<8x8xf32>
    %cst_84 = arith.constant dense<0.000000e+00> : vector<8x256xf32>
    %114 = tpu.matmul %113, %111, %cst_84 {dimension_numbers = #tpu.dot_dimension_numbers<[1], [0], [0], [1], [0, 0, 1, 1], [], []>} : vector<8x8xf32>, vector<8x256xf32>, vector<8x256xf32> -> vector<8x256xf32>
    %115 = arith.addf %106, %114 : vector<8x256xf32>
    %c1_i32_85 = arith.constant 1 : i32
    %116 = tpu.dynamic_rotate %87 by %c1_i32_85 dim 1 : vector<8x256xf32>, i32 -> vector<8x256xf32>
    %c3_86 = arith.constant 3 : index
    %c0_87 = arith.constant 0 : index
    %c0_88 = arith.constant 0 : index
    %117 = vector.load %arg6[%c3_86, %c0_87, %c0_88] : memref<9x1x256xf32, #tpu.memory_space<vmem>>, vector<1x1x256xf32>
    %118 = vector.shape_cast %117 : vector<1x1x256xf32> to vector<1x256xf32>
    %119 = vector.broadcast %118 : vector<1x256xf32> to vector<8x256xf32>
    %120 = arith.mulf %116, %119 : vector<8x256xf32>
    %c3_89 = arith.constant 3 : index
    %c0_90 = arith.constant 0 : index
    %c0_91 = arith.constant 0 : index
    %121 = vector.load %arg4[%c3_89, %c0_90, %c0_91] : memref<9x8x8xf32, #tpu.memory_space<vmem>>, vector<1x8x8xf32>
    %122 = vector.shape_cast %121 : vector<1x8x8xf32> to vector<8x8xf32>
    %cst_92 = arith.constant dense<0.000000e+00> : vector<8x256xf32>
    %123 = tpu.matmul %122, %120, %cst_92 {dimension_numbers = #tpu.dot_dimension_numbers<[1], [0], [0], [1], [0, 0, 1, 1], [], []>} : vector<8x8xf32>, vector<8x256xf32>, vector<8x256xf32> -> vector<8x256xf32>
    %124 = arith.addf %115, %123 : vector<8x256xf32>
    %c4_93 = arith.constant 4 : index
    %c0_94 = arith.constant 0 : index
    %c0_95 = arith.constant 0 : index
    %125 = vector.load %arg6[%c4_93, %c0_94, %c0_95] : memref<9x1x256xf32, #tpu.memory_space<vmem>>, vector<1x1x256xf32>
    %126 = vector.shape_cast %125 : vector<1x1x256xf32> to vector<1x256xf32>
    %127 = vector.broadcast %126 : vector<1x256xf32> to vector<8x256xf32>
    %128 = arith.mulf %87, %127 : vector<8x256xf32>
    %c4_96 = arith.constant 4 : index
    %c0_97 = arith.constant 0 : index
    %c0_98 = arith.constant 0 : index
    %129 = vector.load %arg4[%c4_96, %c0_97, %c0_98] : memref<9x8x8xf32, #tpu.memory_space<vmem>>, vector<1x8x8xf32>
    %130 = vector.shape_cast %129 : vector<1x8x8xf32> to vector<8x8xf32>
    %cst_99 = arith.constant dense<0.000000e+00> : vector<8x256xf32>
    %131 = tpu.matmul %130, %128, %cst_99 {dimension_numbers = #tpu.dot_dimension_numbers<[1], [0], [0], [1], [0, 0, 1, 1], [], []>} : vector<8x8xf32>, vector<8x256xf32>, vector<8x256xf32> -> vector<8x256xf32>
    %132 = arith.addf %124, %131 : vector<8x256xf32>
    %c255_i32_100 = arith.constant 255 : i32
    %133 = tpu.dynamic_rotate %87 by %c255_i32_100 dim 1 : vector<8x256xf32>, i32 -> vector<8x256xf32>
    %c5_101 = arith.constant 5 : index
    %c0_102 = arith.constant 0 : index
    %c0_103 = arith.constant 0 : index
    %134 = vector.load %arg6[%c5_101, %c0_102, %c0_103] : memref<9x1x256xf32, #tpu.memory_space<vmem>>, vector<1x1x256xf32>
    %135 = vector.shape_cast %134 : vector<1x1x256xf32> to vector<1x256xf32>
    %136 = vector.broadcast %135 : vector<1x256xf32> to vector<8x256xf32>
    %137 = arith.mulf %133, %136 : vector<8x256xf32>
    %c5_104 = arith.constant 5 : index
    %c0_105 = arith.constant 0 : index
    %c0_106 = arith.constant 0 : index
    %138 = vector.load %arg4[%c5_104, %c0_105, %c0_106] : memref<9x8x8xf32, #tpu.memory_space<vmem>>, vector<1x8x8xf32>
    %139 = vector.shape_cast %138 : vector<1x8x8xf32> to vector<8x8xf32>
    %cst_107 = arith.constant dense<0.000000e+00> : vector<8x256xf32>
    %140 = tpu.matmul %139, %137, %cst_107 {dimension_numbers = #tpu.dot_dimension_numbers<[1], [0], [0], [1], [0, 0, 1, 1], [], []>} : vector<8x8xf32>, vector<8x256xf32>, vector<8x256xf32> -> vector<8x256xf32>
    %141 = arith.addf %132, %140 : vector<8x256xf32>
    %c241_i32_108 = arith.constant 241 : i32
    %142 = tpu.dynamic_rotate %87 by %c241_i32_108 dim 1 : vector<8x256xf32>, i32 -> vector<8x256xf32>
    %c6_109 = arith.constant 6 : index
    %c0_110 = arith.constant 0 : index
    %c0_111 = arith.constant 0 : index
    %143 = vector.load %arg6[%c6_109, %c0_110, %c0_111] : memref<9x1x256xf32, #tpu.memory_space<vmem>>, vector<1x1x256xf32>
    %144 = vector.shape_cast %143 : vector<1x1x256xf32> to vector<1x256xf32>
    %145 = vector.broadcast %144 : vector<1x256xf32> to vector<8x256xf32>
    %146 = arith.mulf %142, %145 : vector<8x256xf32>
    %c6_112 = arith.constant 6 : index
    %c0_113 = arith.constant 0 : index
    %c0_114 = arith.constant 0 : index
    %147 = vector.load %arg4[%c6_112, %c0_113, %c0_114] : memref<9x8x8xf32, #tpu.memory_space<vmem>>, vector<1x8x8xf32>
    %148 = vector.shape_cast %147 : vector<1x8x8xf32> to vector<8x8xf32>
    %cst_115 = arith.constant dense<0.000000e+00> : vector<8x256xf32>
    %149 = tpu.matmul %148, %146, %cst_115 {dimension_numbers = #tpu.dot_dimension_numbers<[1], [0], [0], [1], [0, 0, 1, 1], [], []>} : vector<8x8xf32>, vector<8x256xf32>, vector<8x256xf32> -> vector<8x256xf32>
    %150 = arith.addf %141, %149 : vector<8x256xf32>
    %c240_i32_116 = arith.constant 240 : i32
    %151 = tpu.dynamic_rotate %87 by %c240_i32_116 dim 1 : vector<8x256xf32>, i32 -> vector<8x256xf32>
    %c7_117 = arith.constant 7 : index
    %c0_118 = arith.constant 0 : index
    %c0_119 = arith.constant 0 : index
    %152 = vector.load %arg6[%c7_117, %c0_118, %c0_119] : memref<9x1x256xf32, #tpu.memory_space<vmem>>, vector<1x1x256xf32>
    %153 = vector.shape_cast %152 : vector<1x1x256xf32> to vector<1x256xf32>
    %154 = vector.broadcast %153 : vector<1x256xf32> to vector<8x256xf32>
    %155 = arith.mulf %151, %154 : vector<8x256xf32>
    %c7_120 = arith.constant 7 : index
    %c0_121 = arith.constant 0 : index
    %c0_122 = arith.constant 0 : index
    %156 = vector.load %arg4[%c7_120, %c0_121, %c0_122] : memref<9x8x8xf32, #tpu.memory_space<vmem>>, vector<1x8x8xf32>
    %157 = vector.shape_cast %156 : vector<1x8x8xf32> to vector<8x8xf32>
    %cst_123 = arith.constant dense<0.000000e+00> : vector<8x256xf32>
    %158 = tpu.matmul %157, %155, %cst_123 {dimension_numbers = #tpu.dot_dimension_numbers<[1], [0], [0], [1], [0, 0, 1, 1], [], []>} : vector<8x8xf32>, vector<8x256xf32>, vector<8x256xf32> -> vector<8x256xf32>
    %159 = arith.addf %150, %158 : vector<8x256xf32>
    %c239_i32_124 = arith.constant 239 : i32
    %160 = tpu.dynamic_rotate %87 by %c239_i32_124 dim 1 : vector<8x256xf32>, i32 -> vector<8x256xf32>
    %c8_125 = arith.constant 8 : index
    %c0_126 = arith.constant 0 : index
    %c0_127 = arith.constant 0 : index
    %161 = vector.load %arg6[%c8_125, %c0_126, %c0_127] : memref<9x1x256xf32, #tpu.memory_space<vmem>>, vector<1x1x256xf32>
    %162 = vector.shape_cast %161 : vector<1x1x256xf32> to vector<1x256xf32>
    %163 = vector.broadcast %162 : vector<1x256xf32> to vector<8x256xf32>
    %164 = arith.mulf %160, %163 : vector<8x256xf32>
    %c8_128 = arith.constant 8 : index
    %c0_129 = arith.constant 0 : index
    %c0_130 = arith.constant 0 : index
    %165 = vector.load %arg4[%c8_128, %c0_129, %c0_130] : memref<9x8x8xf32, #tpu.memory_space<vmem>>, vector<1x8x8xf32>
    %166 = vector.shape_cast %165 : vector<1x8x8xf32> to vector<8x8xf32>
    %cst_131 = arith.constant dense<0.000000e+00> : vector<8x256xf32>
    %167 = tpu.matmul %166, %164, %cst_131 {dimension_numbers = #tpu.dot_dimension_numbers<[1], [0], [0], [1], [0, 0, 1, 1], [], []>} : vector<8x8xf32>, vector<8x256xf32>, vector<8x256xf32> -> vector<8x256xf32>
    %168 = arith.addf %159, %167 : vector<8x256xf32>
    %c0_132 = arith.constant 0 : index
    %c0_133 = arith.constant 0 : index
    %169 = vector.load %arg5[%c0_132, %c0_133] : memref<8x1xf32, #tpu.memory_space<vmem>>, vector<8x1xf32>
    %170 = vector.broadcast %169 : vector<8x1xf32> to vector<8x256xf32>
    %171 = arith.addf %168, %170 : vector<8x256xf32>
    %cst_134 = arith.constant 0.000000e+00 : f32
    %172 = vector.broadcast %cst_134 : f32 to vector<8x256xf32>
    %173 = arith.maximumf %171, %172 : vector<8x256xf32>
    %c0_135 = arith.constant 0 : index
    %c0_136 = arith.constant 0 : index
    %c0_137 = arith.constant 0 : index
    %174 = vector.load %arg7[%c0_135, %c0_136, %c0_137] : memref<1x8x256xf32, #tpu.memory_space<vmem>>, vector<1x8x256xf32>
    %175 = vector.shape_cast %174 : vector<1x8x256xf32> to vector<8x256xf32>
    %176 = vector.shape_cast %173 : vector<8x256xf32> to vector<1x8x256xf32>
    tpu.vector_store %arg7[%c0_135, %c0_136, %c0_137], %176 {strides = array<i32>} : memref<1x8x256xf32, #tpu.memory_space<vmem>>, vector<1x8x256xf32>,
    return
  }
  func.func @transform_0(%arg0: i32) -> (i32, i32, i32) {
    %c0_i32 = arith.constant 0 : i32
    %c0_i32_0 = arith.constant 0 : i32
    %c0_i32_1 = arith.constant 0 : i32
    return %arg0, %c0_i32, %c0_i32_0 : i32, i32, i32
  }
  func.func @transform_1(%arg0: i32) -> (i32, i32, i32) {
    %c0_i32 = arith.constant 0 : i32
    %c0_i32_0 = arith.constant 0 : i32
    %c0_i32_1 = arith.constant 0 : i32
    %c0_i32_2 = arith.constant 0 : i32
    return %c0_i32, %c0_i32_0, %c0_i32_1 : i32, i32, i32
  }
  func.func @transform_2(%arg0: i32) -> (i32, i32) {
    %c0_i32 = arith.constant 0 : i32
    %c0_i32_0 = arith.constant 0 : i32
    %c0_i32_1 = arith.constant 0 : i32
    return %c0_i32, %c0_i32_0 : i32, i32
  }
  func.func @transform_3(%arg0: i32) -> (i32, i32, i32) {
    %c0_i32 = arith.constant 0 : i32
    %c0_i32_0 = arith.constant 0 : i32
    %c0_i32_1 = arith.constant 0 : i32
    %c0_i32_2 = arith.constant 0 : i32
    return %c0_i32, %c0_i32_0, %c0_i32_1 : i32, i32, i32
  }
  func.func @transform_4(%arg0: i32) -> (i32, i32) {
    %c0_i32 = arith.constant 0 : i32
    %c0_i32_0 = arith.constant 0 : i32
    %c0_i32_1 = arith.constant 0 : i32
    return %c0_i32, %c0_i32_0 : i32, i32
  }
  func.func @transform_5(%arg0: i32) -> (i32, i32, i32) {
    %c0_i32 = arith.constant 0 : i32
    %c0_i32_0 = arith.constant 0 : i32
    %c0_i32_1 = arith.constant 0 : i32
    %c0_i32_2 = arith.constant 0 : i32
    return %c0_i32, %c0_i32_0, %c0_i32_1 : i32, i32, i32
  }
  func.func @transform_6(%arg0: i32) -> (i32, i32, i32) {
    %c0_i32 = arith.constant 0 : i32
    %c0_i32_0 = arith.constant 0 : i32
    %c0_i32_1 = arith.constant 0 : i32
    return %arg0, %c0_i32, %c0_i32_0 : i32, i32, i32
  }
}

</mosaic_0001>

<llo_original>
// kernel: base_conv_forward.1
$region0: #{base_conv_forward.1}
  #allocation0 [shape = 'u32[]', space=smem, size = 0x4, offset = 0x4, fixed_abs, tag = 'smem constant byte address 0x4 - core index']
  #allocation1 [shape = 'u32[144,128]{1,0:T(1,128)}', space=vmem, size = 0x12000, scoped, tag = 'internal scratch']
  %s0 = inlined_call_operand.vmem [shape: f32[2,4,256], index: 0, kind: input, shape index: {}]
  %s1 = inlined_call_operand.vmem [shape: f32[9,8,4], index: 1, kind: input, shape index: {}]
  %s2 = inlined_call_operand.hbm [shape: f32[8,1], index: 2, kind: input, shape index: {}]
  %s3 = inlined_call_operand.vmem [shape: f32[9,8,8], index: 3, kind: input, shape index: {}]
  %s4 = inlined_call_operand.vmem [shape: f32[8,1], index: 4, kind: input, shape index: {}]
  %s5 = inlined_call_operand.hbm [shape: f32[9,1,256], index: 5, kind: input, shape index: {}]
  %s6 = inlined_call_operand.vmem [shape: f32[2,8,256], index: 6, kind: output, shape index: {}]
  %s7 = sld [smem:[#allocation0]]
  $region65: #{base_conv_forward.1} parent=0
    _
  %s9 = ssub.s32 1, %s7
  %s10 = scalar_select 0, %s9, %s7
  $region1: #{base_conv_forward.1} parent=0
    #allocation2 [shape = 'u8[4096]{0}', space=vmem, size = 0x1000, scoped, tag = 'input window, operand 2, single buffered']
    #allocation3 [shape = 's32[2]{0}', space=sflag, size = 0x8, scoped, tag = 'scoped memory for base_conv_forward.1']
    #allocation4 [shape = 'u8[9216]{0}', space=vmem, size = 0x2400, scoped, tag = 'input window, operand 5, single buffered']
    #allocation5 [shape = 's32[1]{0}', space=sflag, size = 0x4, scoped, tag = 'scoped memory for base_conv_forward.1']
    %11 = vsyncpa [#allocation3], 0
    %12 = vsyncpa [#allocation5], 0
    loop: start=0, step=1, limit=4
    $region2: #{base_conv_forward.1} parent=1 // loop_pre_header
      _
    $region3: #{base_conv_forward.1} parent=1 // loop_header
      %s14 = sphi 0, %s18
      %p15 = scmp.ge.s32.totalorder %s14, 4
      %s24 = sphi 0, %s26
      %s27 = sphi 0, %s24
      %s28 = sphi 0, %s27
      %s44 = sphi 0, %s28
      %s48 = sphi 0, %s48
      %s50 = sphi 0, %s48
      %s51 = sphi 0, %s50
      %s65 = sphi 0, %s51
      %s69 = sphi 0, %s69
      %s71 = sphi 0, %s69
      %s72 = sphi 0, %s71
      %s86 = sphi 0, %s72
      %s90 = sphi 0, %s90
      %s92 = sphi 0, %s90
      %s93 = sphi 0, %s92
      %s107 = sphi 0, %s93
      %s111 = sphi 0, %s111
      %s113 = sphi 0, %s111
      %s114 = sphi 0, %s113
      %s128 = sphi 0, %s114
      %s132 = sphi 0, %s132
      %s134 = sphi 0, %s132
      %s135 = sphi 0, %s134
      %s149 = sphi 0, %s135
      %s155 = sphi 0, %s157
      %s158 = sphi 0, %s155
      %s159 = sphi 0, %s158
      %s175 = sphi 0, %s159
    $region4: #{base_conv_forward.1} parent=1 // loop_header_branch
      %17 = sbr.rel (%p15) target = $region8
    $region5: #{base_conv_forward.1} parent=1 // loop_body
      %s19 = ssub.s32 %s14, 1
      %s20 = ssub.s32 %s14, 2
      %s21 = sadd.s32 %s14, 1
      %s22 = ssub.s32 %s14, %s21
      %p23 = scmp.eq.s32.totalorder %s22, 0
      %s25 = sadd.s32 %s24, 1
      %s26 = scalar_select %p23, %s24, %s25
      %p29 = pneg %p23
      %p30 = scmp.eq.s32.totalorder %s14, 1
      %p31 = por %p29, %p30
      %p32 = scmp.ne.s32.totalorder %s24, %s27
      %p33 = scmp.eq.s32.totalorder %s14, 0
      %p34 = por %p32, %p33
      %p35 = scmp.ne.s32.totalorder %s24, %s27
      %p36 = scmp.eq.s32.totalorder %s19, 1
      %p37 = por %p35, %p36
      %p38 = scmp.ne.s32.totalorder %s27, %s28
      %p39 = scmp.eq.s32.totalorder %s19, 0
      %p40 = por %p38, %p39
      %p41 = scmp.ne.s32.totalorder %s27, %s28
      %p42 = scmp.eq.s32.totalorder %s20, 1
      %p43 = por %p41, %p42
      %p45 = scmp.ne.s32.totalorder %s28, %s44
      %p46 = scmp.eq.s32.totalorder %s20, 0
      %p47 = por %p45, %p46
      %s49 = sadd.s32 %s48, 1
      %p52 = scmp.eq.s32.totalorder %s14, 1
      %p53 = scmp.ne.s32.totalorder %s48, %s50
      %p54 = scmp.eq.s32.totalorder %s14, 0
      %p55 = por %p53, %p54
      %p56 = scmp.ne.s32.totalorder %s48, %s50
      %p57 = scmp.eq.s32.totalorder %s19, 1
      %p58 = por %p56, %p57
      %p59 = scmp.ne.s32.totalorder %s50, %s51
      %p60 = scmp.eq.s32.totalorder %s19, 0
      %p61 = por %p59, %p60
      %p62 = scmp.ne.s32.totalorder %s50, %s51
      %p63 = scmp.eq.s32.totalorder %s20, 1
      %p64 = por %p62, %p63
      %p66 = scmp.ne.s32.totalorder %s51, %s65
      %p67 = scmp.eq.s32.totalorder %s20, 0
      %p68 = por %p66, %p67
      %s70 = sadd.s32 %s69, 1
      %p73 = scmp.eq.s32.totalorder %s14, 1
      %p74 = scmp.ne.s32.totalorder %s69, %s71
      %p75 = scmp.eq.s32.totalorder %s14, 0
      %p76 = por %p74, %p75
      %p77 = scmp.ne.s32.totalorder %s69, %s71
      %p78 = scmp.eq.s32.totalorder %s19, 1
      %p79 = por %p77, %p78
      %p80 = scmp.ne.s32.totalorder %s71, %s72
      %p81 = scmp.eq.s32.totalorder %s19, 0
      %p82 = por %p80, %p81
      %p83 = scmp.ne.s32.totalorder %s71, %s72
      %p84 = scmp.eq.s32.totalorder %s20, 1
      %p85 = por %p83, %p84
      %p87 = scmp.ne.s32.totalorder %s72, %s86
      %p88 = scmp.eq.s32.totalorder %s20, 0
      %p89 = por %p87, %p88
      %s91 = sadd.s32 %s90, 1
      %p94 = scmp.eq.s32.totalorder %s14, 1
      %p95 = scmp.ne.s32.totalorder %s90, %s92
      %p96 = scmp.eq.s32.totalorder %s14, 0
      %p97 = por %p95, %p96
      %p98 = scmp.ne.s32.totalorder %s90, %s92
      %p99 = scmp.eq.s32.totalorder %s19, 1
      %p100 = por %p98, %p99
      %p101 = scmp.ne.s32.totalorder %s92, %s93
      %p102 = scmp.eq.s32.totalorder %s19, 0
      %p103 = por %p101, %p102
      %p104 = scmp.ne.s32.totalorder %s92, %s93
      %p105 = scmp.eq.s32.totalorder %s20, 1
      %p106 = por %p104, %p105
      %p108 = scmp.ne.s32.totalorder %s93, %s107
      %p109 = scmp.eq.s32.totalorder %s20, 0
      %p110 = por %p108, %p109
      %s112 = sadd.s32 %s111, 1
      %p115 = scmp.eq.s32.totalorder %s14, 1
      %p116 = scmp.ne.s32.totalorder %s111, %s113
      %p117 = scmp.eq.s32.totalorder %s14, 0
      %p118 = por %p116, %p117
      %p119 = scmp.ne.s32.totalorder %s111, %s113
      %p120 = scmp.eq.s32.totalorder %s19, 1
      %p121 = por %p119, %p120
      %p122 = scmp.ne.s32.totalorder %s113, %s114
      %p123 = scmp.eq.s32.totalorder %s19, 0
      %p124 = por %p122, %p123
      %p125 = scmp.ne.s32.totalorder %s113, %s114
      %p126 = scmp.eq.s32.totalorder %s20, 1
      %p127 = por %p125, %p126
      %p129 = scmp.ne.s32.totalorder %s114, %s128
      %p130 = scmp.eq.s32.totalorder %s20, 0
      %p131 = por %p129, %p130
      %s133 = sadd.s32 %s132, 1
      %p136 = scmp.eq.s32.totalorder %s14, 1
      %p137 = scmp.ne.s32.totalorder %s132, %s134
      %p138 = scmp.eq.s32.totalorder %s14, 0
      %p139 = por %p137, %p138
      %p140 = scmp.ne.s32.totalorder %s132, %s134
      %p141 = scmp.eq.s32.totalorder %s19, 1
      %p142 = por %p140, %p141
      %p143 = scmp.ne.s32.totalorder %s134, %s135
      %p144 = scmp.eq.s32.totalorder %s19, 0
      %p145 = por %p143, %p144
      %p146 = scmp.ne.s32.totalorder %s134, %s135
      %p147 = scmp.eq.s32.totalorder %s20, 1
      %p148 = por %p146, %p147
      %p150 = scmp.ne.s32.totalorder %s135, %s149
      %p151 = scmp.eq.s32.totalorder %s20, 0
      %p152 = por %p150, %p151
      %s153 = ssub.s32 %s14, %s21
      %p154 = scmp.eq.s32.totalorder %s153, 0
      %s156 = sadd.s32 %s155, 1
      %s157 = scalar_select %p154, %s155, %s156
      %p160 = pneg %p154
      %p161 = scmp.eq.s32.totalorder %s14, 1
      %p162 = por %p160, %p161
      %p163 = scmp.ne.s32.totalorder %s155, %s158
      %p164 = scmp.eq.s32.totalorder %s14, 0
      %p165 = por %p163, %p164
      %p166 = scmp.ne.s32.totalorder %s155, %s158
      %p167 = scmp.eq.s32.totalorder %s19, 1
      %p168 = por %p166, %p167
      %p169 = scmp.ne.s32.totalorder %s158, %s159
      %p170 = scmp.eq.s32.totalorder %s19, 0
      %p171 = por %p169, %p170
      %p172 = scmp.ne.s32.totalorder %s158, %s159
      %p173 = scmp.eq.s32.totalorder %s20, 1
      %p174 = por %p172, %p173
      %p176 = scmp.ne.s32.totalorder %s159, %s175
      %p177 = scmp.eq.s32.totalorder %s20, 0
      %p178 = por %p176, %p177
      %p179 = scmp.le.s32.totalorder 1, %s14
      %p180 = scmp.lt.s32.totalorder %s14, 3
      %p181 = pnand %p179, %p180
      %p182 = pneg %p181
      // Predicated region
      $region9: #{base_conv_forward.1} parent=5 // pred_check
        _
      $region10: #{base_conv_forward.1} parent=5 // pred_check_branch
        %184 = sbr.rel (%p181) target = $region12
      $region11: #{base_conv_forward.1} parent=5 // pred_region
        %s185 = ssub.s32 %s14, 1
        // Predicated region
        $region13: #{base_conv_forward.1} parent=11 // pred_check
          %p186 = pneg %p61
        $region14: #{base_conv_forward.1} parent=11 // pred_check_branch
          %188 = sbr.rel (%p186) target = $region16
        $region15: #{base_conv_forward.1} parent=11 // pred_region
          _
        $region16: #{base_conv_forward.1} parent=11 // pred_fallthru
          _
        // Predicated region
        $region17: #{base_conv_forward.1} parent=11 // pred_check
          %p189 = pneg %p82
        $region18: #{base_conv_forward.1} parent=11 // pred_check_branch
          %191 = sbr.rel (%p189) target = $region20
        $region19: #{base_conv_forward.1} parent=11 // pred_region
          %s193 = ssub.s32 128, 128
          %194 = vsyncadd [#allocation3], %s193
          %s196 = sshll.u32 [#allocation2], 4
          %s197 = int_to_ptr.vmem [resolvable:$true] %s196
          %199 = dma.hbm_to_vmem [thread:$0]  %s2, 128, %s197, [#allocation3]
        $region20: #{base_conv_forward.1} parent=11 // pred_fallthru
          _
        // Predicated region
        $region21: #{base_conv_forward.1} parent=11 // pred_check
          %p200 = pneg %p103
        $region22: #{base_conv_forward.1} parent=11 // pred_check_branch
          %202 = sbr.rel (%p200) target = $region24
        $region23: #{base_conv_forward.1} parent=11 // pred_region
          _
        $region24: #{base_conv_forward.1} parent=11 // pred_fallthru
          _
        // Predicated region
        $region25: #{base_conv_forward.1} parent=11 // pred_check
          %p203 = pneg %p124
        $region26: #{base_conv_forward.1} parent=11 // pred_check_branch
          %205 = sbr.rel (%p203) target = $region28
        $region27: #{base_conv_forward.1} parent=11 // pred_region
          _
        $region28: #{base_conv_forward.1} parent=11 // pred_fallthru
          _
        // Predicated region
        $region29: #{base_conv_forward.1} parent=11 // pred_check
          %p206 = pneg %p145
        $region30: #{base_conv_forward.1} parent=11 // pred_check_branch
          %208 = sbr.rel (%p206) target = $region32
        $region31: #{base_conv_forward.1} parent=11 // pred_region
          %s210 = ssub.s32 288, 288
          %211 = vsyncadd [#allocation5], %s210
          %s212 = sshll.u32 [#allocation4], 4
          %s213 = int_to_ptr.vmem [resolvable:$true] %s212
          %218 = dma.hbm_to_vmem [thread:$0]  %s5, 288, %s213, [#allocation5], 32, 32, 2
        $region32: #{base_conv_forward.1} parent=11 // pred_fallthru
          _
      $region12: #{base_conv_forward.1} parent=5 // pred_fallthru
        _
      %p219 = scmp.lt.s32.totalorder %s14, 2
      // Predicated region
      $region33: #{base_conv_forward.1} parent=5 // pred_check
        %p220 = pneg %p219
      $region34: #{base_conv_forward.1} parent=5 // pred_check_branch
        %222 = sbr.rel (%p220) target = $region36
      $region35: #{base_conv_forward.1} parent=5 // pred_region
        // Predicated region
        $region37: #{base_conv_forward.1} parent=35 // pred_check
          %p223 = pneg %p34
        $region38: #{base_conv_forward.1} parent=35 // pred_check_branch
          %225 = sbr.rel (%p223) target = $region40
        $region39: #{base_conv_forward.1} parent=35 // pred_region
          %p226 = scmp.lt.s32.totalorder %s14, 1
          %s227 = scalar_select %p226, %s14, 1
          %s228 = smul.addr %s227, 2
          %s229 = smul.addr %s228, 4
          %s230 = scalar_lea.vmem %s0, %s229
        $region40: #{base_conv_forward.1} parent=35 // pred_fallthru
          _
      $region36: #{base_conv_forward.1} parent=5 // pred_fallthru
        _
      %p231 = scmp.le.s32.totalorder 1, %s14
      %p232 = scmp.lt.s32.totalorder %s14, 3
      %p233 = pnand %p231, %p232
      %p234 = pneg %p233
      // Predicated region
      $region41: #{base_conv_forward.1} parent=5 // pred_check
        _
      $region42: #{base_conv_forward.1} parent=5 // pred_check_branch
        %236 = sbr.rel (%p233) target = $region44
      $region43: #{base_conv_forward.1} parent=5 // pred_region
        %s237 = ssub.s32 %s14, 1
        // Predicated region
        $region45: #{base_conv_forward.1} parent=43 // pred_check
          %p238 = pneg %p82
        $region46: #{base_conv_forward.1} parent=43 // pred_check_branch
          %240 = sbr.rel (%p238) target = $region48
        $region47: #{base_conv_forward.1} parent=43 // pred_region
          %241 = dma.done [#allocation3], 128
        $region48: #{base_conv_forward.1} parent=43 // pred_fallthru
          _
        // Predicated region
        $region49: #{base_conv_forward.1} parent=43 // pred_check
          %p242 = pneg %p145
        $region50: #{base_conv_forward.1} parent=43 // pred_check_branch
          %244 = sbr.rel (%p242) target = $region52
        $region51: #{base_conv_forward.1} parent=43 // pred_region
          %245 = dma.done [#allocation5], 288
        $region52: #{base_conv_forward.1} parent=43 // pred_fallthru
          _
        %p246 = scmp.lt.s32.totalorder %s19, 1
        %s247 = scalar_select %p246, %s19, 1
        %s248 = smul.addr %s247, 2
        %s249 = smul.addr %s248, 4
        %s250 = scalar_lea.vmem %s0, %s249
        %p251 = pneg %p40
        %p252 = pneg %p37
        %p253 = pneg %p61
        %p254 = pneg %p58
        %p255 = pneg %p82
        %p256 = pneg %p79
        %p257 = pneg %p103
        %p258 = pneg %p100
        %p259 = pneg %p124
        %p260 = pneg %p121
        %p261 = pneg %p145
        %p262 = pneg %p142
        %p263 = pneg %p171
        %p264 = pneg %p168
        %p265 = scmp.lt.s32.totalorder %s19, 1
        %s266 = scalar_select %p265, %s19, 1
        %s267 = smul.addr %s266, 2
        %s268 = smul.addr %s267, 8
        %s269 = scalar_lea.vmem %s6, %s268
        %p270 = scmp.lt.s32.totalorder %s19, 1
        %s271 = scalar_select %p270, %s19, 1
        %s272 = smul.addr %s271, 2
        %s273 = smul.addr %s272, 4
        %s274 = scalar_lea.vmem %s0, %s273
        %p275 = scmp.lt.s32.totalorder %s19, 1
        %s276 = scalar_select %p275, %s19, 1
        %s277 = smul.addr %s276, 2
        %s278 = smul.addr %s277, 8
        %s279 = scalar_lea.vmem %s6, %s278
        %v280 = vld [vmem:[%s274] sm:$0xff]
        %v282 = vcombine.high %v280, %v280
        %284 = vrot.lane.b32.xlu0 %v280, 17
        %v285 = vpop.permute.xlu0 %284
        %286 = vrot.lane.b32.xlu0 %v282, 17
        %v287 = vpop.permute.xlu0 %286
        %v288 = vlaneseq
        %v289 = vand.u32 %v288, 127
        %vm290 = vcmp.lt.s32.totalorder %v289, 17
        %v291 = vsel %vm290, %v285, %v287
        %v292 = vsel %vm290, %v287, %v285
        %v293 = vld [vmem:[#allocation4] sm:$0x3]
        %v295 = vlaneseq
        %v296 = vshrl.u32 %v295, 7
        %v297 = vsub.s32 0, %v296
        %v298 = vrot.slane %v293, %v297
        %v299 = vlaneseq
        %v300 = vshrl.u32 %v299, 7
        %v301 = vsub.s32 1, %v300
        %v302 = vrot.slane %v293, %v301
        %v305 = vmul.f32 %v292, %v298
        %v306 = vmul.f32 %v291, %v302
        %v307 = vld [vmem:[%s1] sm:$0xff]
        %308 = vrot.lane.b32.xlu0 %v280, 16
        %v309 = vpop.permute.xlu0 %308
        %310 = vrot.lane.b32.xlu0 %v282, 16
        %v311 = vpop.permute.xlu0 %310
        %vm312 = vcmp.lt.s32.totalorder %v289, 16
        %v313 = vsel %vm312, %v309, %v311
        %v314 = vsel %vm312, %v311, %v309
        %s315 = scalar_lea.vmem [#allocation4], 2
        %v316 = vld [vmem:[%s315] sm:$0x3]
        %v318 = vlaneseq
        %v319 = vshrl.u32 %v318, 7
        %v320 = vsub.s32 0, %v319
        %v321 = vrot.slane %v316, %v320
        %v322 = vlaneseq
        %v323 = vshrl.u32 %v322, 7
        %v324 = vsub.s32 1, %v323
        %v325 = vrot.slane %v316, %v324
        %v328 = vmul.f32 %v314, %v321
        %v329 = vmul.f32 %v313, %v325
        %s330 = scalar_lea.vmem %s1, 8
        %v331 = vld [vmem:[%s330] sm:$0xff]
        %vm332 = vcmask 31744
        %v334 = vsel %vm332, %v331, 0
        %vm336 = vcmask 1043456
        %v338 = vsel %vm336, %v328, 0
        %v341 = vsel %vm336, %v329, 0
        %343 = vmatprep.subr.mxu0 0.0
        %344 = vmatpush1.msra.mxu0 0.0
        %345 = vmatprep.subr.mxu0 0.0
        %346 = vmatpush1.msra.mxu0 0.0
        %347 = vmatprep.subr.mxu0 0.0
        %348 = vmatpush1.msra.mxu0 0.0
        %349 = vmatprep.subr.mxu0 0.0
        %350 = vmatpush1.msra.mxu0 0.0
        %351 = vmatprep.subr.mxu0 0.0
        %352 = vmatpush1.msra.mxu0 0.0
        %353 = vmatprep.subr.mxu0 0.0
        %354 = vmatpush1.msra.mxu0 0.0
        %355 = vmatprep.subr.mxu0 0.0
        %356 = vmatpush1.msra.mxu0 0.0
        %357 = vmatprep.subr.mxu0 0.0
        %358 = vmatpush1.msra.mxu0 0.0
        %359 = vmatprep.subr.mxu0 0.0
        %360 = vmatpush1.msra.mxu0 0.0
        %361 = vmatprep.subr.mxu0 0.0
        %362 = vmatpush1.msra.mxu0 0.0
        %363 = vmatprep.subr.mxu0 0.0
        %364 = vmatpush1.msra.mxu0 0.0
        %365 = vmatprep.subr.mxu0 0.0
        %366 = vmatpush1.msra.mxu0 0.0
        %367 = vmatprep.subr.mxu0 0.0
        %368 = vmatpush1.msra.mxu0 0.0
        %369 = vmatprep.subr.mxu0 0.0
        %370 = vmatpush1.msra.mxu0 0.0
        %371 = vmatprep.subr.mxu0 0.0
        %372 = vmatpush1.msra.mxu0 0.0
        %373 = vmatprep.subr.mxu0 %v341
        %374 = vmatpush1.msra.mxu0 %v338
        %375 = vmatprep.subr.mxu0 0.0
        %376 = vmatpush2.msra.mxu0 0.0
        %377 = vmatprep.subr.mxu0 0.0
        %378 = vmatpush2.msra.mxu0 0.0
        %379 = vmatprep.subr.mxu0 0.0
        %380 = vmatpush2.msra.mxu0 0.0
        %381 = vmatprep.subr.mxu0 0.0
        %382 = vmatpush2.msra.mxu0 0.0
        %383 = vmatprep.subr.mxu0 0.0
        %384 = vmatpush2.msra.mxu0 0.0
        %385 = vmatprep.subr.mxu0 0.0
        %386 = vmatpush2.msra.mxu0 0.0
        %387 = vmatprep.subr.mxu0 0.0
        %388 = vmatpush2.msra.mxu0 0.0
        %389 = vmatprep.subr.mxu0 0.0
        %390 = vmatpush2.msra.mxu0 0.0
        %391 = vmatprep.subr.mxu0 0.0
        %392 = vmatpush2.msra.mxu0 0.0
        %393 = vmatprep.subr.mxu0 0.0
        %394 = vmatpush2.msra.mxu0 0.0
        %395 = vmatprep.subr.mxu0 0.0
        %396 = vmatpush2.msra.mxu0 0.0
        %397 = vmatprep.subr.mxu0 0.0
        %398 = vmatpush2.msra.mxu0 0.0
        %399 = vmatprep.subr.mxu0 0.0
        %400 = vmatpush2.msra.mxu0 0.0
        %401 = vmatprep.subr.mxu0 0.0
        %402 = vmatpush2.msra.mxu0 0.0
        %403 = vmatprep.subr.mxu0 0.0
        %404 = vmatpush2.msra.mxu0 0.0
        %405 = vmatprep.subr.mxu0 0.0
        %406 = vmatpush2.msra.mxu0 0.0
        %407 = vmatprep.mubr.f32.mxu0 0.0
        %408 = vmatmul.mubr.f32.gmra.mxu0 %v334
        %v409 = vpop.f32.mrf.mxu0
        %v410 = vadd.f32 0.0, %v409
        %v411 = vpop.f32.mrf.mxu0
        %v412 = vadd.f32 0.0, %v411
        %413 = vdwg.mxu0
        %v415 = vsel %vm332, %v307, 0
        %v418 = vsel %vm336, %v305, 0
        %v421 = vsel %vm336, %v306, 0
        %423 = vmatprep.subr.mxu0 0.0
        %424 = vmatpush1.msra.mxu0 0.0
        %425 = vmatprep.subr.mxu0 0.0
        %426 = vmatpush1.msra.mxu0 0.0
        %427 = vmatprep.subr.mxu0 0.0
        %428 = vmatpush1.msra.mxu0 0.0
        %429 = vmatprep.subr.mxu0 0.0
        %430 = vmatpush1.msra.mxu0 0.0
        %431 = vmatprep.subr.mxu0 0.0
        %432 = vmatpush1.msra.mxu0 0.0
        %433 = vmatprep.subr.mxu0 0.0
        %434 = vmatpush1.msra.mxu0 0.0
        %435 = vmatprep.subr.mxu0 0.0
        %436 = vmatpush1.msra.mxu0 0.0
        %437 = vmatprep.subr.mxu0 0.0
        %438 = vmatpush1.msra.mxu0 0.0
        %439 = vmatprep.subr.mxu0 0.0
        %440 = vmatpush1.msra.mxu0 0.0
        %441 = vmatprep.subr.mxu0 0.0
        %442 = vmatpush1.msra.mxu0 0.0
        %443 = vmatprep.subr.mxu0 0.0
        %444 = vmatpush1.msra.mxu0 0.0
        %445 = vmatprep.subr.mxu0 0.0
        %446 = vmatpush1.msra.mxu0 0.0
        %447 = vmatprep.subr.mxu0 0.0
        %448 = vmatpush1.msra.mxu0 0.0
        %449 = vmatprep.subr.mxu0 0.0
        %450 = vmatpush1.msra.mxu0 0.0
        %451 = vmatprep.subr.mxu0 0.0
        %452 = vmatpush1.msra.mxu0 0.0
        %453 = vmatprep.subr.mxu0 %v421
        %454 = vmatpush1.msra.mxu0 %v418
        %455 = vmatprep.subr.mxu0 0.0
        %456 = vmatpush2.msra.mxu0 0.0
        %457 = vmatprep.subr.mxu0 0.0
        %458 = vmatpush2.msra.mxu0 0.0
        %459 = vmatprep.subr.mxu0 0.0
        %460 = vmatpush2.msra.mxu0 0.0
        %461 = vmatprep.subr.mxu0 0.0
        %462 = vmatpush2.msra.mxu0 0.0
        %463 = vmatprep.subr.mxu0 0.0
        %464 = vmatpush2.msra.mxu0 0.0
        %465 = vmatprep.subr.mxu0 0.0
        %466 = vmatpush2.msra.mxu0 0.0
        %467 = vmatprep.subr.mxu0 0.0
        %468 = vmatpush2.msra.mxu0 0.0
        %469 = vmatprep.subr.mxu0 0.0
        %470 = vmatpush2.msra.mxu0 0.0
        %471 = vmatprep.subr.mxu0 0.0
        %472 = vmatpush2.msra.mxu0 0.0
        %473 = vmatprep.subr.mxu0 0.0
        %474 = vmatpush2.msra.mxu0 0.0
        %475 = vmatprep.subr.mxu0 0.0
        %476 = vmatpush2.msra.mxu0 0.0
        %477 = vmatprep.subr.mxu0 0.0
        %478 = vmatpush2.msra.mxu0 0.0
        %479 = vmatprep.subr.mxu0 0.0
        %480 = vmatpush2.msra.mxu0 0.0
        %481 = vmatprep.subr.mxu0 0.0
        %482 = vmatpush2.msra.mxu0 0.0
        %483 = vmatprep.subr.mxu0 0.0
        %484 = vmatpush2.msra.mxu0 0.0
        %485 = vmatprep.subr.mxu0 0.0
        %486 = vmatpush2.msra.mxu0 0.0
        %487 = vmatprep.mubr.f32.mxu0 0.0
        %488 = vmatmul.mubr.f32.gmra.mxu0 %v415
        %v489 = vpop.f32.mrf.mxu0
        %v490 = vadd.f32 %v410, %v489
        %v491 = vpop.f32.mrf.mxu0
        %v492 = vadd.f32 %v412, %v491
        %493 = vdwg.mxu0
        %494 = vrot.lane.b32.xlu0 %v280, 15
        %v495 = vpop.permute.xlu0 %494
        %496 = vrot.lane.b32.xlu0 %v282, 15
        %v497 = vpop.permute.xlu0 %496
        %vm498 = vcmp.lt.s32.totalorder %v289, 15
        %v499 = vsel %vm498, %v495, %v497
        %v500 = vsel %vm498, %v497, %v495
        %s501 = scalar_lea.vmem [#allocation4], 4
        %v502 = vld [vmem:[%s501] sm:$0x3]
        %v504 = vlaneseq
        %v505 = vshrl.u32 %v504, 7
        %v506 = vsub.s32 0, %v505
        %v507 = vrot.slane %v502, %v506
        %v508 = vlaneseq
        %v509 = vshrl.u32 %v508, 7
        %v510 = vsub.s32 1, %v509
        %v511 = vrot.slane %v502, %v510
        %v514 = vmul.f32 %v500, %v507
        %v515 = vmul.f32 %v499, %v511
        %s516 = scalar_lea.vmem %s1, 16
        %v517 = vld [vmem:[%s516] sm:$0xff]
        %v519 = vsel %vm332, %v517, 0
        %v522 = vsel %vm336, %v514, 0
        %v525 = vsel %vm336, %v515, 0
        %527 = vmatprep.subr.mxu0 0.0
        %528 = vmatpush1.msra.mxu0 0.0
        %529 = vmatprep.subr.mxu0 0.0
        %530 = vmatpush1.msra.mxu0 0.0
        %531 = vmatprep.subr.mxu0 0.0
        %532 = vmatpush1.msra.mxu0 0.0
        %533 = vmatprep.subr.mxu0 0.0
        %534 = vmatpush1.msra.mxu0 0.0
        %535 = vmatprep.subr.mxu0 0.0
        %536 = vmatpush1.msra.mxu0 0.0
        %537 = vmatprep.subr.mxu0 0.0
        %538 = vmatpush1.msra.mxu0 0.0
        %539 = vmatprep.subr.mxu0 0.0
        %540 = vmatpush1.msra.mxu0 0.0
        %541 = vmatprep.subr.mxu0 0.0
        %542 = vmatpush1.msra.mxu0 0.0
        %543 = vmatprep.subr.mxu0 0.0
        %544 = vmatpush1.msra.mxu0 0.0
        %545 = vmatprep.subr.mxu0 0.0
        %546 = vmatpush1.msra.mxu0 0.0
        %547 = vmatprep.subr.mxu0 0.0
        %548 = vmatpush1.msra.mxu0 0.0
        %549 = vmatprep.subr.mxu0 0.0
        %550 = vmatpush1.msra.mxu0 0.0
        %551 = vmatprep.subr.mxu0 0.0
        %552 = vmatpush1.msra.mxu0 0.0
        %553 = vmatprep.subr.mxu0 0.0
        %554 = vmatpush1.msra.mxu0 0.0
        %555 = vmatprep.subr.mxu0 0.0
        %556 = vmatpush1.msra.mxu0 0.0
        %557 = vmatprep.subr.mxu0 %v525
        %558 = vmatpush1.msra.mxu0 %v522
        %559 = vmatprep.subr.mxu0 0.0
        %560 = vmatpush2.msra.mxu0 0.0
        %561 = vmatprep.subr.mxu0 0.0
        %562 = vmatpush2.msra.mxu0 0.0
        %563 = vmatprep.subr.mxu0 0.0
        %564 = vmatpush2.msra.mxu0 0.0
        %565 = vmatprep.subr.mxu0 0.0
        %566 = vmatpush2.msra.mxu0 0.0
        %567 = vmatprep.subr.mxu0 0.0
        %568 = vmatpush2.msra.mxu0 0.0
        %569 = vmatprep.subr.mxu0 0.0
        %570 = vmatpush2.msra.mxu0 0.0
        %571 = vmatprep.subr.mxu0 0.0
        %572 = vmatpush2.msra.mxu0 0.0
        %573 = vmatprep.subr.mxu0 0.0
        %574 = vmatpush2.msra.mxu0 0.0
        %575 = vmatprep.subr.mxu0 0.0
        %576 = vmatpush2.msra.mxu0 0.0
        %577 = vmatprep.subr.mxu0 0.0
        %578 = vmatpush2.msra.mxu0 0.0
        %579 = vmatprep.subr.mxu0 0.0
        %580 = vmatpush2.msra.mxu0 0.0
        %581 = vmatprep.subr.mxu0 0.0
        %582 = vmatpush2.msra.mxu0 0.0
        %583 = vmatprep.subr.mxu0 0.0
        %584 = vmatpush2.msra.mxu0 0.0
        %585 = vmatprep.subr.mxu0 0.0
        %586 = vmatpush2.msra.mxu0 0.0
        %587 = vmatprep.subr.mxu0 0.0
        %588 = vmatpush2.msra.mxu0 0.0
        %589 = vmatprep.subr.mxu0 0.0
        %590 = vmatpush2.msra.mxu0 0.0
        %591 = vmatprep.mubr.f32.mxu0 0.0
        %592 = vmatmul.mubr.f32.gmra.mxu0 %v519
        %v593 = vpop.f32.mrf.mxu0
        %v594 = vadd.f32 0.0, %v593
        %v595 = vpop.f32.mrf.mxu0
        %v596 = vadd.f32 0.0, %v595
        %597 = vdwg.mxu0
        %v598 = vadd.f32 %v490, %v594
        %v599 = vadd.f32 %v492, %v596
        %600 = vrot.lane.b32.xlu0 %v280, 1
        %v601 = vpop.permute.xlu0 %600
        %602 = vrot.lane.b32.xlu0 %v282, 1
        %v603 = vpop.permute.xlu0 %602
        %vm604 = vcmp.lt.s32.totalorder %v289, 1
        %v605 = vsel %vm604, %v601, %v603
        %v606 = vsel %vm604, %v603, %v601
        %s607 = scalar_lea.vmem [#allocation4], 6
        %v608 = vld [vmem:[%s607] sm:$0x3]
        %v610 = vlaneseq
        %v611 = vshrl.u32 %v610, 7
        %v612 = vsub.s32 0, %v611
        %v613 = vrot.slane %v608, %v612
        %v614 = vlaneseq
        %v615 = vshrl.u32 %v614, 7
        %v616 = vsub.s32 1, %v615
        %v617 = vrot.slane %v608, %v616
        %v620 = vmul.f32 %v606, %v613
        %v621 = vmul.f32 %v605, %v617
        %s622 = scalar_lea.vmem %s1, 24
        %v623 = vld [vmem:[%s622] sm:$0xff]
        %v625 = vsel %vm332, %v623, 0
        %v628 = vsel %vm336, %v620, 0
        %v631 = vsel %vm336, %v621, 0
        %633 = vmatprep.subr.mxu0 0.0
        %634 = vmatpush1.msra.mxu0 0.0
        %635 = vmatprep.subr.mxu0 0.0
        %636 = vmatpush1.msra.mxu0 0.0
        %637 = vmatprep.subr.mxu0 0.0
        %638 = vmatpush1.msra.mxu0 0.0
        %639 = vmatprep.subr.mxu0 0.0
        %640 = vmatpush1.msra.mxu0 0.0
        %641 = vmatprep.subr.mxu0 0.0
        %642 = vmatpush1.msra.mxu0 0.0
        %643 = vmatprep.subr.mxu0 0.0
        %644 = vmatpush1.msra.mxu0 0.0
        %645 = vmatprep.subr.mxu0 0.0
        %646 = vmatpush1.msra.mxu0 0.0
        %647 = vmatprep.subr.mxu0 0.0
        %648 = vmatpush1.msra.mxu0 0.0
        %649 = vmatprep.subr.mxu0 0.0
        %650 = vmatpush1.msra.mxu0 0.0
        %651 = vmatprep.subr.mxu0 0.0
        %652 = vmatpush1.msra.mxu0 0.0
        %653 = vmatprep.subr.mxu0 0.0
        %654 = vmatpush1.msra.mxu0 0.0
        %655 = vmatprep.subr.mxu0 0.0
        %656 = vmatpush1.msra.mxu0 0.0
        %657 = vmatprep.subr.mxu0 0.0
        %658 = vmatpush1.msra.mxu0 0.0
        %659 = vmatprep.subr.mxu0 0.0
        %660 = vmatpush1.msra.mxu0 0.0
        %661 = vmatprep.subr.mxu0 0.0
        %662 = vmatpush1.msra.mxu0 0.0
        %663 = vmatprep.subr.mxu0 %v631
        %664 = vmatpush1.msra.mxu0 %v628
        %665 = vmatprep.subr.mxu0 0.0
        %666 = vmatpush2.msra.mxu0 0.0
        %667 = vmatprep.subr.mxu0 0.0
        %668 = vmatpush2.msra.mxu0 0.0
        %669 = vmatprep.subr.mxu0 0.0
        %670 = vmatpush2.msra.mxu0 0.0
        %671 = vmatprep.subr.mxu0 0.0
        %672 = vmatpush2.msra.mxu0 0.0
        %673 = vmatprep.subr.mxu0 0.0
        %674 = vmatpush2.msra.mxu0 0.0
        %675 = vmatprep.subr.mxu0 0.0
        %676 = vmatpush2.msra.mxu0 0.0
        %677 = vmatprep.subr.mxu0 0.0
        %678 = vmatpush2.msra.mxu0 0.0
        %679 = vmatprep.subr.mxu0 0.0
        %680 = vmatpush2.msra.mxu0 0.0
        %681 = vmatprep.subr.mxu0 0.0
        %682 = vmatpush2.msra.mxu0 0.0
        %683 = vmatprep.subr.mxu0 0.0
        %684 = vmatpush2.msra.mxu0 0.0
        %685 = vmatprep.subr.mxu0 0.0
        %686 = vmatpush2.msra.mxu0 0.0
        %687 = vmatprep.subr.mxu0 0.0
        %688 = vmatpush2.msra.mxu0 0.0
        %689 = vmatprep.subr.mxu0 0.0
        %690 = vmatpush2.msra.mxu0 0.0
        %691 = vmatprep.subr.mxu0 0.0
        %692 = vmatpush2.msra.mxu0 0.0
        %693 = vmatprep.subr.mxu0 0.0
        %694 = vmatpush2.msra.mxu0 0.0
        %695 = vmatprep.subr.mxu0 0.0
        %696 = vmatpush2.msra.mxu0 0.0
        %697 = vmatprep.mubr.f32.mxu0 0.0
        %698 = vmatmul.mubr.f32.gmra.mxu0 %v625
        %v699 = vpop.f32.mrf.mxu0
        %v700 = vadd.f32 0.0, %v699
        %v701 = vpop.f32.mrf.mxu0
        %v702 = vadd.f32 0.0, %v701
        %703 = vdwg.mxu0
        %v704 = vadd.f32 %v598, %v700
        %v705 = vadd.f32 %v599, %v702
        %s706 = scalar_lea.vmem [#allocation4], 8
        %v707 = vld [vmem:[%s706] sm:$0x3]
        %v709 = vlaneseq
        %v710 = vshrl.u32 %v709, 7
        %v711 = vsub.s32 0, %v710
        %v712 = vrot.slane %v707, %v711
        %v713 = vlaneseq
        %v714 = vshrl.u32 %v713, 7
        %v715 = vsub.s32 1, %v714
        %v716 = vrot.slane %v707, %v715
        %v717 = vcombine.low %v712, %v716
        %v719 = vmul.f32 %v280, %v717
        %s720 = scalar_lea.vmem %s1, 32
        %v721 = vld [vmem:[%s720] sm:$0xff]
        %v723 = vcombine.high %v719, %v719
        %v725 = vsel %vm332, %v721, 0
        %v727 = vsel %vm336, %v719, 0
        %v729 = vsel %vm336, %v723, 0
        %731 = vmatprep.subr.mxu0 0.0
        %732 = vmatpush1.msra.mxu0 0.0
        %733 = vmatprep.subr.mxu0 0.0
        %734 = vmatpush1.msra.mxu0 0.0
        %735 = vmatprep.subr.mxu0 0.0
        %736 = vmatpush1.msra.mxu0 0.0
        %737 = vmatprep.subr.mxu0 0.0
        %738 = vmatpush1.msra.mxu0 0.0
        %739 = vmatprep.subr.mxu0 0.0
        %740 = vmatpush1.msra.mxu0 0.0
        %741 = vmatprep.subr.mxu0 0.0
        %742 = vmatpush1.msra.mxu0 0.0
        %743 = vmatprep.subr.mxu0 0.0
        %744 = vmatpush1.msra.mxu0 0.0
        %745 = vmatprep.subr.mxu0 0.0
        %746 = vmatpush1.msra.mxu0 0.0
        %747 = vmatprep.subr.mxu0 0.0
        %748 = vmatpush1.msra.mxu0 0.0
        %749 = vmatprep.subr.mxu0 0.0
        %750 = vmatpush1.msra.mxu0 0.0
        %751 = vmatprep.subr.mxu0 0.0
        %752 = vmatpush1.msra.mxu0 0.0
        %753 = vmatprep.subr.mxu0 0.0
        %754 = vmatpush1.msra.mxu0 0.0
        %755 = vmatprep.subr.mxu0 0.0
        %756 = vmatpush1.msra.mxu0 0.0
        %757 = vmatprep.subr.mxu0 0.0
        %758 = vmatpush1.msra.mxu0 0.0
        %759 = vmatprep.subr.mxu0 0.0
        %760 = vmatpush1.msra.mxu0 0.0
        %761 = vmatprep.subr.mxu0 %v729
        %762 = vmatpush1.msra.mxu0 %v727
        %763 = vmatprep.subr.mxu0 0.0
        %764 = vmatpush2.msra.mxu0 0.0
        %765 = vmatprep.subr.mxu0 0.0
        %766 = vmatpush2.msra.mxu0 0.0
        %767 = vmatprep.subr.mxu0 0.0
        %768 = vmatpush2.msra.mxu0 0.0
        %769 = vmatprep.subr.mxu0 0.0
        %770 = vmatpush2.msra.mxu0 0.0
        %771 = vmatprep.subr.mxu0 0.0
        %772 = vmatpush2.msra.mxu0 0.0
        %773 = vmatprep.subr.mxu0 0.0
        %774 = vmatpush2.msra.mxu0 0.0
        %775 = vmatprep.subr.mxu0 0.0
        %776 = vmatpush2.msra.mxu0 0.0
        %777 = vmatprep.subr.mxu0 0.0
        %778 = vmatpush2.msra.mxu0 0.0
        %779 = vmatprep.subr.mxu0 0.0
        %780 = vmatpush2.msra.mxu0 0.0
        %781 = vmatprep.subr.mxu0 0.0
        %782 = vmatpush2.msra.mxu0 0.0
        %783 = vmatprep.subr.mxu0 0.0
        %784 = vmatpush2.msra.mxu0 0.0
        %785 = vmatprep.subr.mxu0 0.0
        %786 = vmatpush2.msra.mxu0 0.0
        %787 = vmatprep.subr.mxu0 0.0
        %788 = vmatpush2.msra.mxu0 0.0
        %789 = vmatprep.subr.mxu0 0.0
        %790 = vmatpush2.msra.mxu0 0.0
        %791 = vmatprep.subr.mxu0 0.0
        %792 = vmatpush2.msra.mxu0 0.0
        %793 = vmatprep.subr.mxu0 0.0
        %794 = vmatpush2.msra.mxu0 0.0
        %795 = vmatprep.mubr.f32.mxu0 0.0
        %796 = vmatmul.mubr.f32.gmra.mxu0 %v725
        %v797 = vpop.f32.mrf.mxu0
        %v798 = vadd.f32 0.0, %v797
        %v799 = vpop.f32.mrf.mxu0
        %v800 = vadd.f32 0.0, %v799
        %801 = vdwg.mxu0
        %v802 = vadd.f32 %v704, %v798
        %v803 = vadd.f32 %v705, %v800
        %804 = vrot.lane.b32.xlu0 %v280, 127
        %v805 = vpop.permute.xlu0 %804
        %806 = vrot.lane.b32.xlu0 %v282, 127
        %v807 = vpop.permute.xlu0 %806
        %vm808 = vcmp.lt.s32.totalorder %v289, 127
        %v809 = vsel %vm808, %v805, %v807
        %v810 = vsel %vm808, %v807, %v805
        %s811 = scalar_lea.vmem [#allocation4], 10
        %v812 = vld [vmem:[%s811] sm:$0x3]
        %v814 = vlaneseq
        %v815 = vshrl.u32 %v814, 7
        %v816 = vsub.s32 0, %v815
        %v817 = vrot.slane %v812, %v816
        %v818 = vlaneseq
        %v819 = vshrl.u32 %v818, 7
        %v820 = vsub.s32 1, %v819
        %v821 = vrot.slane %v812, %v820
        %v824 = vmul.f32 %v809, %v817
        %v825 = vmul.f32 %v810, %v821
        %s826 = scalar_lea.vmem %s1, 40
        %v827 = vld [vmem:[%s826] sm:$0xff]
        %v829 = vsel %vm332, %v827, 0
        %v832 = vsel %vm336, %v824, 0
        %v835 = vsel %vm336, %v825, 0
        %837 = vmatprep.subr.mxu0 0.0
        %838 = vmatpush1.msra.mxu0 0.0
        %839 = vmatprep.subr.mxu0 0.0
        %840 = vmatpush1.msra.mxu0 0.0
        %841 = vmatprep.subr.mxu0 0.0
        %842 = vmatpush1.msra.mxu0 0.0
        %843 = vmatprep.subr.mxu0 0.0
        %844 = vmatpush1.msra.mxu0 0.0
        %845 = vmatprep.subr.mxu0 0.0
        %846 = vmatpush1.msra.mxu0 0.0
        %847 = vmatprep.subr.mxu0 0.0
        %848 = vmatpush1.msra.mxu0 0.0
        %849 = vmatprep.subr.mxu0 0.0
        %850 = vmatpush1.msra.mxu0 0.0
        %851 = vmatprep.subr.mxu0 0.0
        %852 = vmatpush1.msra.mxu0 0.0
        %853 = vmatprep.subr.mxu0 0.0
        %854 = vmatpush1.msra.mxu0 0.0
        %855 = vmatprep.subr.mxu0 0.0
        %856 = vmatpush1.msra.mxu0 0.0
        %857 = vmatprep.subr.mxu0 0.0
        %858 = vmatpush1.msra.mxu0 0.0
        %859 = vmatprep.subr.mxu0 0.0
        %860 = vmatpush1.msra.mxu0 0.0
        %861 = vmatprep.subr.mxu0 0.0
        %862 = vmatpush1.msra.mxu0 0.0
        %863 = vmatprep.subr.mxu0 0.0
        %864 = vmatpush1.msra.mxu0 0.0
        %865 = vmatprep.subr.mxu0 0.0
        %866 = vmatpush1.msra.mxu0 0.0
        %867 = vmatprep.subr.mxu0 %v835
        %868 = vmatpush1.msra.mxu0 %v832
        %869 = vmatprep.subr.mxu0 0.0
        %870 = vmatpush2.msra.mxu0 0.0
        %871 = vmatprep.subr.mxu0 0.0
        %872 = vmatpush2.msra.mxu0 0.0
        %873 = vmatprep.subr.mxu0 0.0
        %874 = vmatpush2.msra.mxu0 0.0
        %875 = vmatprep.subr.mxu0 0.0
        %876 = vmatpush2.msra.mxu0 0.0
        %877 = vmatprep.subr.mxu0 0.0
        %878 = vmatpush2.msra.mxu0 0.0
        %879 = vmatprep.subr.mxu0 0.0
        %880 = vmatpush2.msra.mxu0 0.0
        %881 = vmatprep.subr.mxu0 0.0
        %882 = vmatpush2.msra.mxu0 0.0
        %883 = vmatprep.subr.mxu0 0.0
        %884 = vmatpush2.msra.mxu0 0.0
        %885 = vmatprep.subr.mxu0 0.0
        %886 = vmatpush2.msra.mxu0 0.0
        %887 = vmatprep.subr.mxu0 0.0
        %888 = vmatpush2.msra.mxu0 0.0
        %889 = vmatprep.subr.mxu0 0.0
        %890 = vmatpush2.msra.mxu0 0.0
        %891 = vmatprep.subr.mxu0 0.0
        %892 = vmatpush2.msra.mxu0 0.0
        %893 = vmatprep.subr.mxu0 0.0
        %894 = vmatpush2.msra.mxu0 0.0
        %895 = vmatprep.subr.mxu0 0.0
        %896 = vmatpush2.msra.mxu0 0.0
        %897 = vmatprep.subr.mxu0 0.0
        %898 = vmatpush2.msra.mxu0 0.0
        %899 = vmatprep.subr.mxu0 0.0
        %900 = vmatpush2.msra.mxu0 0.0
        %901 = vmatprep.mubr.f32.mxu0 0.0
        %902 = vmatmul.mubr.f32.gmra.mxu0 %v829
        %v903 = vpop.f32.mrf.mxu0
        %v904 = vadd.f32 0.0, %v903
        %v905 = vpop.f32.mrf.mxu0
        %v906 = vadd.f32 0.0, %v905
        %907 = vdwg.mxu0
        %v908 = vadd.f32 %v802, %v904
        %v909 = vadd.f32 %v803, %v906
        %910 = vrot.lane.b32.xlu0 %v280, 113
        %v911 = vpop.permute.xlu0 %910
        %912 = vrot.lane.b32.xlu0 %v282, 113
        %v913 = vpop.permute.xlu0 %912
        %vm914 = vcmp.lt.s32.totalorder %v289, 113
        %v915 = vsel %vm914, %v911, %v913
        %v916 = vsel %vm914, %v913, %v911
        %s917 = scalar_lea.vmem [#allocation4], 12
        %v918 = vld [vmem:[%s917] sm:$0x3]
        %v920 = vlaneseq
        %v921 = vshrl.u32 %v920, 7
        %v922 = vsub.s32 0, %v921
        %v923 = vrot.slane %v918, %v922
        %v924 = vlaneseq
        %v925 = vshrl.u32 %v924, 7
        %v926 = vsub.s32 1, %v925
        %v927 = vrot.slane %v918, %v926
        %v930 = vmul.f32 %v915, %v923
        %v931 = vmul.f32 %v916, %v927
        %s932 = scalar_lea.vmem %s1, 48
        %v933 = vld [vmem:[%s932] sm:$0xff]
        %v935 = vsel %vm332, %v933, 0
        %v938 = vsel %vm336, %v930, 0
        %v941 = vsel %vm336, %v931, 0
        %943 = vmatprep.subr.mxu0 0.0
        %944 = vmatpush1.msra.mxu0 0.0
        %945 = vmatprep.subr.mxu0 0.0
        %946 = vmatpush1.msra.mxu0 0.0
        %947 = vmatprep.subr.mxu0 0.0
        %948 = vmatpush1.msra.mxu0 0.0
        %949 = vmatprep.subr.mxu0 0.0
        %950 = vmatpush1.msra.mxu0 0.0
        %951 = vmatprep.subr.mxu0 0.0
        %952 = vmatpush1.msra.mxu0 0.0
        %953 = vmatprep.subr.mxu0 0.0
        %954 = vmatpush1.msra.mxu0 0.0
        %955 = vmatprep.subr.mxu0 0.0
        %956 = vmatpush1.msra.mxu0 0.0
        %957 = vmatprep.subr.mxu0 0.0
        %958 = vmatpush1.msra.mxu0 0.0
        %959 = vmatprep.subr.mxu0 0.0
        %960 = vmatpush1.msra.mxu0 0.0
        %961 = vmatprep.subr.mxu0 0.0
        %962 = vmatpush1.msra.mxu0 0.0
        %963 = vmatprep.subr.mxu0 0.0
        %964 = vmatpush1.msra.mxu0 0.0
        %965 = vmatprep.subr.mxu0 0.0
        %966 = vmatpush1.msra.mxu0 0.0
        %967 = vmatprep.subr.mxu0 0.0
        %968 = vmatpush1.msra.mxu0 0.0
        %969 = vmatprep.subr.mxu0 0.0
        %970 = vmatpush1.msra.mxu0 0.0
        %971 = vmatprep.subr.mxu0 0.0
        %972 = vmatpush1.msra.mxu0 0.0
        %973 = vmatprep.subr.mxu0 %v941
        %974 = vmatpush1.msra.mxu0 %v938
        %975 = vmatprep.subr.mxu0 0.0
        %976 = vmatpush2.msra.mxu0 0.0
        %977 = vmatprep.subr.mxu0 0.0
        %978 = vmatpush2.msra.mxu0 0.0
        %979 = vmatprep.subr.mxu0 0.0
        %980 = vmatpush2.msra.mxu0 0.0
        %981 = vmatprep.subr.mxu0 0.0
        %982 = vmatpush2.msra.mxu0 0.0
        %983 = vmatprep.subr.mxu0 0.0
        %984 = vmatpush2.msra.mxu0 0.0
        %985 = vmatprep.subr.mxu0 0.0
        %986 = vmatpush2.msra.mxu0 0.0
        %987 = vmatprep.subr.mxu0 0.0
        %988 = vmatpush2.msra.mxu0 0.0
        %989 = vmatprep.subr.mxu0 0.0
        %990 = vmatpush2.msra.mxu0 0.0
        %991 = vmatprep.subr.mxu0 0.0
        %992 = vmatpush2.msra.mxu0 0.0
        %993 = vmatprep.subr.mxu0 0.0
        %994 = vmatpush2.msra.mxu0 0.0
        %995 = vmatprep.subr.mxu0 0.0
        %996 = vmatpush2.msra.mxu0 0.0
        %997 = vmatprep.subr.mxu0 0.0
        %998 = vmatpush2.msra.mxu0 0.0
        %999 = vmatprep.subr.mxu0 0.0
        %1000 = vmatpush2.msra.mxu0 0.0
        %1001 = vmatprep.subr.mxu0 0.0
        %1002 = vmatpush2.msra.mxu0 0.0
        %1003 = vmatprep.subr.mxu0 0.0
        %1004 = vmatpush2.msra.mxu0 0.0
        %1005 = vmatprep.subr.mxu0 0.0
        %1006 = vmatpush2.msra.mxu0 0.0
        %1007 = vmatprep.mubr.f32.mxu0 0.0
        %1008 = vmatmul.mubr.f32.gmra.mxu0 %v935
        %v1009 = vpop.f32.mrf.mxu0
        %v1010 = vadd.f32 0.0, %v1009
        %v1011 = vpop.f32.mrf.mxu0
        %v1012 = vadd.f32 0.0, %v1011
        %1013 = vdwg.mxu0
        %v1014 = vadd.f32 %v908, %v1010
        %v1015 = vadd.f32 %v909, %v1012
        %1016 = vrot.lane.b32.xlu0 %v280, 112
        %v1017 = vpop.permute.xlu0 %1016
        %1018 = vrot.lane.b32.xlu0 %v282, 112
        %v1019 = vpop.permute.xlu0 %1018
        %vm1020 = vcmp.lt.s32.totalorder %v289, 112
        %v1021 = vsel %vm1020, %v1017, %v1019
        %v1022 = vsel %vm1020, %v1019, %v1017
        %s1023 = scalar_lea.vmem [#allocation4], 14
        %v1024 = vld [vmem:[%s1023] sm:$0x3]
        %v1026 = vlaneseq
        %v1027 = vshrl.u32 %v1026, 7
        %v1028 = vsub.s32 0, %v1027
        %v1029 = vrot.slane %v1024, %v1028
        %v1030 = vlaneseq
        %v1031 = vshrl.u32 %v1030, 7
        %v1032 = vsub.s32 1, %v1031
        %v1033 = vrot.slane %v1024, %v1032
        %v1036 = vmul.f32 %v1021, %v1029
        %v1037 = vmul.f32 %v1022, %v1033
        %s1038 = scalar_lea.vmem %s1, 56
        %v1039 = vld [vmem:[%s1038] sm:$0xff]
        %v1041 = vsel %vm332, %v1039, 0
        %v1044 = vsel %vm336, %v1036, 0
        %v1047 = vsel %vm336, %v1037, 0
        %1049 = vmatprep.subr.mxu0 0.0
        %1050 = vmatpush1.msra.mxu0 0.0
        %1051 = vmatprep.subr.mxu0 0.0
        %1052 = vmatpush1.msra.mxu0 0.0
        %1053 = vmatprep.subr.mxu0 0.0
        %1054 = vmatpush1.msra.mxu0 0.0
        %1055 = vmatprep.subr.mxu0 0.0
        %1056 = vmatpush1.msra.mxu0 0.0
        %1057 = vmatprep.subr.mxu0 0.0
        %1058 = vmatpush1.msra.mxu0 0.0
        %1059 = vmatprep.subr.mxu0 0.0
        %1060 = vmatpush1.msra.mxu0 0.0
        %1061 = vmatprep.subr.mxu0 0.0
        %1062 = vmatpush1.msra.mxu0 0.0
        %1063 = vmatprep.subr.mxu0 0.0
        %1064 = vmatpush1.msra.mxu0 0.0
        %1065 = vmatprep.subr.mxu0 0.0
        %1066 = vmatpush1.msra.mxu0 0.0
        %1067 = vmatprep.subr.mxu0 0.0
        %1068 = vmatpush1.msra.mxu0 0.0
        %1069 = vmatprep.subr.mxu0 0.0
        %1070 = vmatpush1.msra.mxu0 0.0
        %1071 = vmatprep.subr.mxu0 0.0
        %1072 = vmatpush1.msra.mxu0 0.0
        %1073 = vmatprep.subr.mxu0 0.0
        %1074 = vmatpush1.msra.mxu0 0.0
        %1075 = vmatprep.subr.mxu0 0.0
        %1076 = vmatpush1.msra.mxu0 0.0
        %1077 = vmatprep.subr.mxu0 0.0
        %1078 = vmatpush1.msra.mxu0 0.0
        %1079 = vmatprep.subr.mxu0 %v1047
        %1080 = vmatpush1.msra.mxu0 %v1044
        %1081 = vmatprep.subr.mxu0 0.0
        %1082 = vmatpush2.msra.mxu0 0.0
        %1083 = vmatprep.subr.mxu0 0.0
        %1084 = vmatpush2.msra.mxu0 0.0
        %1085 = vmatprep.subr.mxu0 0.0
        %1086 = vmatpush2.msra.mxu0 0.0
        %1087 = vmatprep.subr.mxu0 0.0
        %1088 = vmatpush2.msra.mxu0 0.0
        %1089 = vmatprep.subr.mxu0 0.0
        %1090 = vmatpush2.msra.mxu0 0.0
        %1091 = vmatprep.subr.mxu0 0.0
        %1092 = vmatpush2.msra.mxu0 0.0
        %1093 = vmatprep.subr.mxu0 0.0
        %1094 = vmatpush2.msra.mxu0 0.0
        %1095 = vmatprep.subr.mxu0 0.0
        %1096 = vmatpush2.msra.mxu0 0.0
        %1097 = vmatprep.subr.mxu0 0.0
        %1098 = vmatpush2.msra.mxu0 0.0
        %1099 = vmatprep.subr.mxu0 0.0
        %1100 = vmatpush2.msra.mxu0 0.0
        %1101 = vmatprep.subr.mxu0 0.0
        %1102 = vmatpush2.msra.mxu0 0.0
        %1103 = vmatprep.subr.mxu0 0.0
        %1104 = vmatpush2.msra.mxu0 0.0
        %1105 = vmatprep.subr.mxu0 0.0
        %1106 = vmatpush2.msra.mxu0 0.0
        %1107 = vmatprep.subr.mxu0 0.0
        %1108 = vmatpush2.msra.mxu0 0.0
        %1109 = vmatprep.subr.mxu0 0.0
        %1110 = vmatpush2.msra.mxu0 0.0
        %1111 = vmatprep.subr.mxu0 0.0
        %1112 = vmatpush2.msra.mxu0 0.0
        %1113 = vmatprep.mubr.f32.mxu0 0.0
        %1114 = vmatmul.mubr.f32.gmra.mxu0 %v1041
        %v1115 = vpop.f32.mrf.mxu0
        %v1116 = vadd.f32 0.0, %v1115
        %v1117 = vpop.f32.mrf.mxu0
        %v1118 = vadd.f32 0.0, %v1117
        %1119 = vdwg.mxu0
        %v1120 = vadd.f32 %v1014, %v1116
        %v1121 = vadd.f32 %v1015, %v1118
        %1122 = vrot.lane.b32.xlu0 %v280, 111
        %v1123 = vpop.permute.xlu0 %1122
        %1124 = vrot.lane.b32.xlu0 %v282, 111
        %v1125 = vpop.permute.xlu0 %1124
        %vm1126 = vcmp.lt.s32.totalorder %v289, 111
        %v1127 = vsel %vm1126, %v1123, %v1125
        %v1128 = vsel %vm1126, %v1125, %v1123
        %s1129 = scalar_lea.vmem [#allocation4], 16
        %v1130 = vld [vmem:[%s1129] sm:$0x3]
        %v1132 = vlaneseq
        %v1133 = vshrl.u32 %v1132, 7
        %v1134 = vsub.s32 0, %v1133
        %v1135 = vrot.slane %v1130, %v1134
        %v1136 = vlaneseq
        %v1137 = vshrl.u32 %v1136, 7
        %v1138 = vsub.s32 1, %v1137
        %v1139 = vrot.slane %v1130, %v1138
        %v1142 = vmul.f32 %v1127, %v1135
        %v1143 = vmul.f32 %v1128, %v1139
        %s1144 = scalar_lea.vmem %s1, 64
        %v1145 = vld [vmem:[%s1144] sm:$0xff]
        %v1147 = vsel %vm332, %v1145, 0
        %v1150 = vsel %vm336, %v1142, 0
        %v1153 = vsel %vm336, %v1143, 0
        %1155 = vmatprep.subr.mxu0 0.0
        %1156 = vmatpush1.msra.mxu0 0.0
        %1157 = vmatprep.subr.mxu0 0.0
        %1158 = vmatpush1.msra.mxu0 0.0
        %1159 = vmatprep.subr.mxu0 0.0
        %1160 = vmatpush1.msra.mxu0 0.0
        %1161 = vmatprep.subr.mxu0 0.0
        %1162 = vmatpush1.msra.mxu0 0.0
        %1163 = vmatprep.subr.mxu0 0.0
        %1164 = vmatpush1.msra.mxu0 0.0
        %1165 = vmatprep.subr.mxu0 0.0
        %1166 = vmatpush1.msra.mxu0 0.0
        %1167 = vmatprep.subr.mxu0 0.0
        %1168 = vmatpush1.msra.mxu0 0.0
        %1169 = vmatprep.subr.mxu0 0.0
        %1170 = vmatpush1.msra.mxu0 0.0
        %1171 = vmatprep.subr.mxu0 0.0
        %1172 = vmatpush1.msra.mxu0 0.0
        %1173 = vmatprep.subr.mxu0 0.0
        %1174 = vmatpush1.msra.mxu0 0.0
        %1175 = vmatprep.subr.mxu0 0.0
        %1176 = vmatpush1.msra.mxu0 0.0
        %1177 = vmatprep.subr.mxu0 0.0
        %1178 = vmatpush1.msra.mxu0 0.0
        %1179 = vmatprep.subr.mxu0 0.0
        %1180 = vmatpush1.msra.mxu0 0.0
        %1181 = vmatprep.subr.mxu0 0.0
        %1182 = vmatpush1.msra.mxu0 0.0
        %1183 = vmatprep.subr.mxu0 0.0
        %1184 = vmatpush1.msra.mxu0 0.0
        %1185 = vmatprep.subr.mxu0 %v1153
        %1186 = vmatpush1.msra.mxu0 %v1150
        %1187 = vmatprep.subr.mxu0 0.0
        %1188 = vmatpush2.msra.mxu0 0.0
        %1189 = vmatprep.subr.mxu0 0.0
        %1190 = vmatpush2.msra.mxu0 0.0
        %1191 = vmatprep.subr.mxu0 0.0
        %1192 = vmatpush2.msra.mxu0 0.0
        %1193 = vmatprep.subr.mxu0 0.0
        %1194 = vmatpush2.msra.mxu0 0.0
        %1195 = vmatprep.subr.mxu0 0.0
        %1196 = vmatpush2.msra.mxu0 0.0
        %1197 = vmatprep.subr.mxu0 0.0
        %1198 = vmatpush2.msra.mxu0 0.0
        %1199 = vmatprep.subr.mxu0 0.0
        %1200 = vmatpush2.msra.mxu0 0.0
        %1201 = vmatprep.subr.mxu0 0.0
        %1202 = vmatpush2.msra.mxu0 0.0
        %1203 = vmatprep.subr.mxu0 0.0
        %1204 = vmatpush2.msra.mxu0 0.0
        %1205 = vmatprep.subr.mxu0 0.0
        %1206 = vmatpush2.msra.mxu0 0.0
        %1207 = vmatprep.subr.mxu0 0.0
        %1208 = vmatpush2.msra.mxu0 0.0
        %1209 = vmatprep.subr.mxu0 0.0
        %1210 = vmatpush2.msra.mxu0 0.0
        %1211 = vmatprep.subr.mxu0 0.0
        %1212 = vmatpush2.msra.mxu0 0.0
        %1213 = vmatprep.subr.mxu0 0.0
        %1214 = vmatpush2.msra.mxu0 0.0
        %1215 = vmatprep.subr.mxu0 0.0
        %1216 = vmatpush2.msra.mxu0 0.0
        %1217 = vmatprep.subr.mxu0 0.0
        %1218 = vmatpush2.msra.mxu0 0.0
        %1219 = vmatprep.mubr.f32.mxu0 0.0
        %1220 = vmatmul.mubr.f32.gmra.mxu0 %v1147
        %v1221 = vpop.f32.mrf.mxu0
        %v1222 = vadd.f32 0.0, %v1221
        %v1223 = vpop.f32.mrf.mxu0
        %v1224 = vadd.f32 0.0, %v1223
        %1225 = vdwg.mxu0
        %v1226 = vadd.f32 %v1120, %v1222
        %v1227 = vadd.f32 %v1121, %v1224
        %v1228 = vld [vmem:[#allocation2] sm:$0xff]
        %1230 = vset.pattern.permute.xlu0 0
        %1231 = vperm.xlu0 %1230, %v1228
        %v1232 = vpop.permute.xlu0 %1231
        %v1234 = vadd.f32 %v1226, %v1232
        %v1235 = vadd.f32 %v1227, %v1232
        %v1236 = vmax.f32 %v1234, 0.0
        %v1237 = vmax.f32 %v1235, 0.0
        %1238 = vrot.lane.b32.xlu0 %v1236, 17
        %v1239 = vpop.permute.xlu0 %1238
        %1240 = vrot.lane.b32.xlu0 %v1237, 17
        %v1241 = vpop.permute.xlu0 %1240
        %v1242 = vsel %vm290, %v1239, %v1241
        %v1243 = vsel %vm290, %v1241, %v1239
        %v1244 = vmul.f32 %v1243, %v298
        %v1245 = vmul.f32 %v1242, %v302
        %v1246 = vld [vmem:[%s3] sm:$0xff]
        %1247 = vrot.lane.b32.xlu0 %v1236, 16
        %v1248 = vpop.permute.xlu0 %1247
        %1249 = vrot.lane.b32.xlu0 %v1237, 16
        %v1250 = vpop.permute.xlu0 %1249
        %v1251 = vsel %vm312, %v1248, %v1250
        %v1252 = vsel %vm312, %v1250, %v1248
        %v1253 = vmul.f32 %v1252, %v321
        %v1254 = vmul.f32 %v1251, %v325
        %s1255 = scalar_lea.vmem %s3, 8
        %v1256 = vld [vmem:[%s1255] sm:$0xff]
        %vm1257 = vcmask 64512
        %v1259 = vsel %vm1257, %v1256, 0
        %1261 = vmatprep.subr.mxu0 0.0
        %1262 = vmatpush1.msra.mxu0 0.0
        %1263 = vmatprep.subr.mxu0 0.0
        %1264 = vmatpush1.msra.mxu0 0.0
        %1265 = vmatprep.subr.mxu0 0.0
        %1266 = vmatpush1.msra.mxu0 0.0
        %1267 = vmatprep.subr.mxu0 0.0
        %1268 = vmatpush1.msra.mxu0 0.0
        %1269 = vmatprep.subr.mxu0 0.0
        %1270 = vmatpush1.msra.mxu0 0.0
        %1271 = vmatprep.subr.mxu0 0.0
        %1272 = vmatpush1.msra.mxu0 0.0
        %1273 = vmatprep.subr.mxu0 0.0
        %1274 = vmatpush1.msra.mxu0 0.0
        %1275 = vmatprep.subr.mxu0 0.0
        %1276 = vmatpush1.msra.mxu0 0.0
        %1277 = vmatprep.subr.mxu0 0.0
        %1278 = vmatpush1.msra.mxu0 0.0
        %1279 = vmatprep.subr.mxu0 0.0
        %1280 = vmatpush1.msra.mxu0 0.0
        %1281 = vmatprep.subr.mxu0 0.0
        %1282 = vmatpush1.msra.mxu0 0.0
        %1283 = vmatprep.subr.mxu0 0.0
        %1284 = vmatpush1.msra.mxu0 0.0
        %1285 = vmatprep.subr.mxu0 0.0
        %1286 = vmatpush1.msra.mxu0 0.0
        %1287 = vmatprep.subr.mxu0 0.0
        %1288 = vmatpush1.msra.mxu0 0.0
        %1289 = vmatprep.subr.mxu0 0.0
        %1290 = vmatpush1.msra.mxu0 0.0
        %1291 = vmatprep.subr.mxu0 %v1254
        %1292 = vmatpush1.msra.mxu0 %v1253
        %1293 = vmatprep.subr.mxu0 0.0
        %1294 = vmatpush2.msra.mxu0 0.0
        %1295 = vmatprep.subr.mxu0 0.0
        %1296 = vmatpush2.msra.mxu0 0.0
        %1297 = vmatprep.subr.mxu0 0.0
        %1298 = vmatpush2.msra.mxu0 0.0
        %1299 = vmatprep.subr.mxu0 0.0
        %1300 = vmatpush2.msra.mxu0 0.0
        %1301 = vmatprep.subr.mxu0 0.0
        %1302 = vmatpush2.msra.mxu0 0.0
        %1303 = vmatprep.subr.mxu0 0.0
        %1304 = vmatpush2.msra.mxu0 0.0
        %1305 = vmatprep.subr.mxu0 0.0
        %1306 = vmatpush2.msra.mxu0 0.0
        %1307 = vmatprep.subr.mxu0 0.0
        %1308 = vmatpush2.msra.mxu0 0.0
        %1309 = vmatprep.subr.mxu0 0.0
        %1310 = vmatpush2.msra.mxu0 0.0
        %1311 = vmatprep.subr.mxu0 0.0
        %1312 = vmatpush2.msra.mxu0 0.0
        %1313 = vmatprep.subr.mxu0 0.0
        %1314 = vmatpush2.msra.mxu0 0.0
        %1315 = vmatprep.subr.mxu0 0.0
        %1316 = vmatpush2.msra.mxu0 0.0
        %1317 = vmatprep.subr.mxu0 0.0
        %1318 = vmatpush2.msra.mxu0 0.0
        %1319 = vmatprep.subr.mxu0 0.0
        %1320 = vmatpush2.msra.mxu0 0.0
        %1321 = vmatprep.subr.mxu0 0.0
        %1322 = vmatpush2.msra.mxu0 0.0
        %1323 = vmatprep.subr.mxu0 0.0
        %1324 = vmatpush2.msra.mxu0 0.0
        %1325 = vmatprep.mubr.f32.mxu0 0.0
        %1326 = vmatmul.mubr.f32.gmra.mxu0 %v1259
        %v1327 = vpop.f32.mrf.mxu0
        %v1328 = vadd.f32 0.0, %v1327
        %v1329 = vpop.f32.mrf.mxu0
        %v1330 = vadd.f32 0.0, %v1329
        %1331 = vdwg.mxu0
        %v1333 = vsel %vm1257, %v1246, 0
        %1335 = vmatprep.subr.mxu0 0.0
        %1336 = vmatpush1.msra.mxu0 0.0
        %1337 = vmatprep.subr.mxu0 0.0
        %1338 = vmatpush1.msra.mxu0 0.0
        %1339 = vmatprep.subr.mxu0 0.0
        %1340 = vmatpush1.msra.mxu0 0.0
        %1341 = vmatprep.subr.mxu0 0.0
        %1342 = vmatpush1.msra.mxu0 0.0
        %1343 = vmatprep.subr.mxu0 0.0
        %1344 = vmatpush1.msra.mxu0 0.0
        %1345 = vmatprep.subr.mxu0 0.0
        %1346 = vmatpush1.msra.mxu0 0.0
        %1347 = vmatprep.subr.mxu0 0.0
        %1348 = vmatpush1.msra.mxu0 0.0
        %1349 = vmatprep.subr.mxu0 0.0
        %1350 = vmatpush1.msra.mxu0 0.0
        %1351 = vmatprep.subr.mxu0 0.0
        %1352 = vmatpush1.msra.mxu0 0.0
        %1353 = vmatprep.subr.mxu0 0.0
        %1354 = vmatpush1.msra.mxu0 0.0
        %1355 = vmatprep.subr.mxu0 0.0
        %1356 = vmatpush1.msra.mxu0 0.0
        %1357 = vmatprep.subr.mxu0 0.0
        %1358 = vmatpush1.msra.mxu0 0.0
        %1359 = vmatprep.subr.mxu0 0.0
        %1360 = vmatpush1.msra.mxu0 0.0
        %1361 = vmatprep.subr.mxu0 0.0
        %1362 = vmatpush1.msra.mxu0 0.0
        %1363 = vmatprep.subr.mxu0 0.0
        %1364 = vmatpush1.msra.mxu0 0.0
        %1365 = vmatprep.subr.mxu0 %v1245
        %1366 = vmatpush1.msra.mxu0 %v1244
        %1367 = vmatprep.subr.mxu0 0.0
        %1368 = vmatpush2.msra.mxu0 0.0
        %1369 = vmatprep.subr.mxu0 0.0
        %1370 = vmatpush2.msra.mxu0 0.0
        %1371 = vmatprep.subr.mxu0 0.0
        %1372 = vmatpush2.msra.mxu0 0.0
        %1373 = vmatprep.subr.mxu0 0.0
        %1374 = vmatpush2.msra.mxu0 0.0
        %1375 = vmatprep.subr.mxu0 0.0
        %1376 = vmatpush2.msra.mxu0 0.0
        %1377 = vmatprep.subr.mxu0 0.0
        %1378 = vmatpush2.msra.mxu0 0.0
        %1379 = vmatprep.subr.mxu0 0.0
        %1380 = vmatpush2.msra.mxu0 0.0
        %1381 = vmatprep.subr.mxu0 0.0
        %1382 = vmatpush2.msra.mxu0 0.0
        %1383 = vmatprep.subr.mxu0 0.0
        %1384 = vmatpush2.msra.mxu0 0.0
        %1385 = vmatprep.subr.mxu0 0.0
        %1386 = vmatpush2.msra.mxu0 0.0
        %1387 = vmatprep.subr.mxu0 0.0
        %1388 = vmatpush2.msra.mxu0 0.0
        %1389 = vmatprep.subr.mxu0 0.0
        %1390 = vmatpush2.msra.mxu0 0.0
        %1391 = vmatprep.subr.mxu0 0.0
        %1392 = vmatpush2.msra.mxu0 0.0
        %1393 = vmatprep.subr.mxu0 0.0
        %1394 = vmatpush2.msra.mxu0 0.0
        %1395 = vmatprep.subr.mxu0 0.0
        %1396 = vmatpush2.msra.mxu0 0.0
        %1397 = vmatprep.subr.mxu0 0.0
        %1398 = vmatpush2.msra.mxu0 0.0
        %1399 = vmatprep.mubr.f32.mxu0 0.0
        %1400 = vmatmul.mubr.f32.gmra.mxu0 %v1333
        %v1401 = vpop.f32.mrf.mxu0
        %v1402 = vadd.f32 %v1328, %v1401
        %v1403 = vpop.f32.mrf.mxu0
        %v1404 = vadd.f32 %v1330, %v1403
        %1405 = vdwg.mxu0
        %1406 = vrot.lane.b32.xlu0 %v1236, 15
        %v1407 = vpop.permute.xlu0 %1406
        %1408 = vrot.lane.b32.xlu0 %v1237, 15
        %v1409 = vpop.permute.xlu0 %1408
        %v1410 = vsel %vm498, %v1407, %v1409
        %v1411 = vsel %vm498, %v1409, %v1407
        %v1412 = vmul.f32 %v1411, %v507
        %v1413 = vmul.f32 %v1410, %v511
        %s1414 = scalar_lea.vmem %s3, 16
        %v1415 = vld [vmem:[%s1414] sm:$0xff]
        %v1417 = vsel %vm1257, %v1415, 0
        %1419 = vmatprep.subr.mxu0 0.0
        %1420 = vmatpush1.msra.mxu0 0.0
        %1421 = vmatprep.subr.mxu0 0.0
        %1422 = vmatpush1.msra.mxu0 0.0
        %1423 = vmatprep.subr.mxu0 0.0
        %1424 = vmatpush1.msra.mxu0 0.0
        %1425 = vmatprep.subr.mxu0 0.0
        %1426 = vmatpush1.msra.mxu0 0.0
        %1427 = vmatprep.subr.mxu0 0.0
        %1428 = vmatpush1.msra.mxu0 0.0
        %1429 = vmatprep.subr.mxu0 0.0
        %1430 = vmatpush1.msra.mxu0 0.0
        %1431 = vmatprep.subr.mxu0 0.0
        %1432 = vmatpush1.msra.mxu0 0.0
        %1433 = vmatprep.subr.mxu0 0.0
        %1434 = vmatpush1.msra.mxu0 0.0
        %1435 = vmatprep.subr.mxu0 0.0
        %1436 = vmatpush1.msra.mxu0 0.0
        %1437 = vmatprep.subr.mxu0 0.0
        %1438 = vmatpush1.msra.mxu0 0.0
        %1439 = vmatprep.subr.mxu0 0.0
        %1440 = vmatpush1.msra.mxu0 0.0
        %1441 = vmatprep.subr.mxu0 0.0
        %1442 = vmatpush1.msra.mxu0 0.0
        %1443 = vmatprep.subr.mxu0 0.0
        %1444 = vmatpush1.msra.mxu0 0.0
        %1445 = vmatprep.subr.mxu0 0.0
        %1446 = vmatpush1.msra.mxu0 0.0
        %1447 = vmatprep.subr.mxu0 0.0
        %1448 = vmatpush1.msra.mxu0 0.0
        %1449 = vmatprep.subr.mxu0 %v1413
        %1450 = vmatpush1.msra.mxu0 %v1412
        %1451 = vmatprep.subr.mxu0 0.0
        %1452 = vmatpush2.msra.mxu0 0.0
        %1453 = vmatprep.subr.mxu0 0.0
        %1454 = vmatpush2.msra.mxu0 0.0
        %1455 = vmatprep.subr.mxu0 0.0
        %1456 = vmatpush2.msra.mxu0 0.0
        %1457 = vmatprep.subr.mxu0 0.0
        %1458 = vmatpush2.msra.mxu0 0.0
        %1459 = vmatprep.subr.mxu0 0.0
        %1460 = vmatpush2.msra.mxu0 0.0
        %1461 = vmatprep.subr.mxu0 0.0
        %1462 = vmatpush2.msra.mxu0 0.0
        %1463 = vmatprep.subr.mxu0 0.0
        %1464 = vmatpush2.msra.mxu0 0.0
        %1465 = vmatprep.subr.mxu0 0.0
        %1466 = vmatpush2.msra.mxu0 0.0
        %1467 = vmatprep.subr.mxu0 0.0
        %1468 = vmatpush2.msra.mxu0 0.0
        %1469 = vmatprep.subr.mxu0 0.0
        %1470 = vmatpush2.msra.mxu0 0.0
        %1471 = vmatprep.subr.mxu0 0.0
        %1472 = vmatpush2.msra.mxu0 0.0
        %1473 = vmatprep.subr.mxu0 0.0
        %1474 = vmatpush2.msra.mxu0 0.0
        %1475 = vmatprep.subr.mxu0 0.0
        %1476 = vmatpush2.msra.mxu0 0.0
        %1477 = vmatprep.subr.mxu0 0.0
        %1478 = vmatpush2.msra.mxu0 0.0
        %1479 = vmatprep.subr.mxu0 0.0
        %1480 = vmatpush2.msra.mxu0 0.0
        %1481 = vmatprep.subr.mxu0 0.0
        %1482 = vmatpush2.msra.mxu0 0.0
        %1483 = vmatprep.mubr.f32.mxu0 0.0
        %1484 = vmatmul.mubr.f32.gmra.mxu0 %v1417
        %v1485 = vpop.f32.mrf.mxu0
        %v1486 = vadd.f32 0.0, %v1485
        %v1487 = vpop.f32.mrf.mxu0
        %v1488 = vadd.f32 0.0, %v1487
        %1489 = vdwg.mxu0
        %v1490 = vadd.f32 %v1402, %v1486
        %v1491 = vadd.f32 %v1404, %v1488
        %1492 = vrot.lane.b32.xlu0 %v1236, 1
        %v1493 = vpop.permute.xlu0 %1492
        %1494 = vrot.lane.b32.xlu0 %v1237, 1
        %v1495 = vpop.permute.xlu0 %1494
        %v1496 = vsel %vm604, %v1493, %v1495
        %v1497 = vsel %vm604, %v1495, %v1493
        %v1498 = vmul.f32 %v1497, %v613
        %v1499 = vmul.f32 %v1496, %v617
        %s1500 = scalar_lea.vmem %s3, 24
        %v1501 = vld [vmem:[%s1500] sm:$0xff]
        %v1503 = vsel %vm1257, %v1501, 0
        %1505 = vmatprep.subr.mxu0 0.0
        %1506 = vmatpush1.msra.mxu0 0.0
        %1507 = vmatprep.subr.mxu0 0.0
        %1508 = vmatpush1.msra.mxu0 0.0
        %1509 = vmatprep.subr.mxu0 0.0
        %1510 = vmatpush1.msra.mxu0 0.0
        %1511 = vmatprep.subr.mxu0 0.0
        %1512 = vmatpush1.msra.mxu0 0.0
        %1513 = vmatprep.subr.mxu0 0.0
        %1514 = vmatpush1.msra.mxu0 0.0
        %1515 = vmatprep.subr.mxu0 0.0
        %1516 = vmatpush1.msra.mxu0 0.0
        %1517 = vmatprep.subr.mxu0 0.0
        %1518 = vmatpush1.msra.mxu0 0.0
        %1519 = vmatprep.subr.mxu0 0.0
        %1520 = vmatpush1.msra.mxu0 0.0
        %1521 = vmatprep.subr.mxu0 0.0
        %1522 = vmatpush1.msra.mxu0 0.0
        %1523 = vmatprep.subr.mxu0 0.0
        %1524 = vmatpush1.msra.mxu0 0.0
        %1525 = vmatprep.subr.mxu0 0.0
        %1526 = vmatpush1.msra.mxu0 0.0
        %1527 = vmatprep.subr.mxu0 0.0
        %1528 = vmatpush1.msra.mxu0 0.0
        %1529 = vmatprep.subr.mxu0 0.0
        %1530 = vmatpush1.msra.mxu0 0.0
        %1531 = vmatprep.subr.mxu0 0.0
        %1532 = vmatpush1.msra.mxu0 0.0
        %1533 = vmatprep.subr.mxu0 0.0
        %1534 = vmatpush1.msra.mxu0 0.0
        %1535 = vmatprep.subr.mxu0 %v1499
        %1536 = vmatpush1.msra.mxu0 %v1498
        %1537 = vmatprep.subr.mxu0 0.0
        %1538 = vmatpush2.msra.mxu0 0.0
        %1539 = vmatprep.subr.mxu0 0.0
        %1540 = vmatpush2.msra.mxu0 0.0
        %1541 = vmatprep.subr.mxu0 0.0
        %1542 = vmatpush2.msra.mxu0 0.0
        %1543 = vmatprep.subr.mxu0 0.0
        %1544 = vmatpush2.msra.mxu0 0.0
        %1545 = vmatprep.subr.mxu0 0.0
        %1546 = vmatpush2.msra.mxu0 0.0
        %1547 = vmatprep.subr.mxu0 0.0
        %1548 = vmatpush2.msra.mxu0 0.0
        %1549 = vmatprep.subr.mxu0 0.0
        %1550 = vmatpush2.msra.mxu0 0.0
        %1551 = vmatprep.subr.mxu0 0.0
        %1552 = vmatpush2.msra.mxu0 0.0
        %1553 = vmatprep.subr.mxu0 0.0
        %1554 = vmatpush2.msra.mxu0 0.0
        %1555 = vmatprep.subr.mxu0 0.0
        %1556 = vmatpush2.msra.mxu0 0.0
        %1557 = vmatprep.subr.mxu0 0.0
        %1558 = vmatpush2.msra.mxu0 0.0
        %1559 = vmatprep.subr.mxu0 0.0
        %1560 = vmatpush2.msra.mxu0 0.0
        %1561 = vmatprep.subr.mxu0 0.0
        %1562 = vmatpush2.msra.mxu0 0.0
        %1563 = vmatprep.subr.mxu0 0.0
        %1564 = vmatpush2.msra.mxu0 0.0
        %1565 = vmatprep.subr.mxu0 0.0
        %1566 = vmatpush2.msra.mxu0 0.0
        %1567 = vmatprep.subr.mxu0 0.0
        %1568 = vmatpush2.msra.mxu0 0.0
        %1569 = vmatprep.mubr.f32.mxu0 0.0
        %1570 = vmatmul.mubr.f32.gmra.mxu0 %v1503
        %v1571 = vpop.f32.mrf.mxu0
        %v1572 = vadd.f32 0.0, %v1571
        %v1573 = vpop.f32.mrf.mxu0
        %v1574 = vadd.f32 0.0, %v1573
        %1575 = vdwg.mxu0
        %v1576 = vadd.f32 %v1490, %v1572
        %v1577 = vadd.f32 %v1491, %v1574
        %v1580 = vmul.f32 %v1236, %v712
        %v1581 = vmul.f32 %v1237, %v716
        %s1582 = scalar_lea.vmem %s3, 32
        %v1583 = vld [vmem:[%s1582] sm:$0xff]
        %v1585 = vsel %vm1257, %v1583, 0
        %1587 = vmatprep.subr.mxu0 0.0
        %1588 = vmatpush1.msra.mxu0 0.0
        %1589 = vmatprep.subr.mxu0 0.0
        %1590 = vmatpush1.msra.mxu0 0.0
        %1591 = vmatprep.subr.mxu0 0.0
        %1592 = vmatpush1.msra.mxu0 0.0
        %1593 = vmatprep.subr.mxu0 0.0
        %1594 = vmatpush1.msra.mxu0 0.0
        %1595 = vmatprep.subr.mxu0 0.0
        %1596 = vmatpush1.msra.mxu0 0.0
        %1597 = vmatprep.subr.mxu0 0.0
        %1598 = vmatpush1.msra.mxu0 0.0
        %1599 = vmatprep.subr.mxu0 0.0
        %1600 = vmatpush1.msra.mxu0 0.0
        %1601 = vmatprep.subr.mxu0 0.0
        %1602 = vmatpush1.msra.mxu0 0.0
        %1603 = vmatprep.subr.mxu0 0.0
        %1604 = vmatpush1.msra.mxu0 0.0
        %1605 = vmatprep.subr.mxu0 0.0
        %1606 = vmatpush1.msra.mxu0 0.0
        %1607 = vmatprep.subr.mxu0 0.0
        %1608 = vmatpush1.msra.mxu0 0.0
        %1609 = vmatprep.subr.mxu0 0.0
        %1610 = vmatpush1.msra.mxu0 0.0
        %1611 = vmatprep.subr.mxu0 0.0
        %1612 = vmatpush1.msra.mxu0 0.0
        %1613 = vmatprep.subr.mxu0 0.0
        %1614 = vmatpush1.msra.mxu0 0.0
        %1615 = vmatprep.subr.mxu0 0.0
        %1616 = vmatpush1.msra.mxu0 0.0
        %1617 = vmatprep.subr.mxu0 %v1581
        %1618 = vmatpush1.msra.mxu0 %v1580
        %1619 = vmatprep.subr.mxu0 0.0
        %1620 = vmatpush2.msra.mxu0 0.0
        %1621 = vmatprep.subr.mxu0 0.0
        %1622 = vmatpush2.msra.mxu0 0.0
        %1623 = vmatprep.subr.mxu0 0.0
        %1624 = vmatpush2.msra.mxu0 0.0
        %1625 = vmatprep.subr.mxu0 0.0
        %1626 = vmatpush2.msra.mxu0 0.0
        %1627 = vmatprep.subr.mxu0 0.0
        %1628 = vmatpush2.msra.mxu0 0.0
        %1629 = vmatprep.subr.mxu0 0.0
        %1630 = vmatpush2.msra.mxu0 0.0
        %1631 = vmatprep.subr.mxu0 0.0
        %1632 = vmatpush2.msra.mxu0 0.0
        %1633 = vmatprep.subr.mxu0 0.0
        %1634 = vmatpush2.msra.mxu0 0.0
        %1635 = vmatprep.subr.mxu0 0.0
        %1636 = vmatpush2.msra.mxu0 0.0
        %1637 = vmatprep.subr.mxu0 0.0
        %1638 = vmatpush2.msra.mxu0 0.0
        %1639 = vmatprep.subr.mxu0 0.0
        %1640 = vmatpush2.msra.mxu0 0.0
        %1641 = vmatprep.subr.mxu0 0.0
        %1642 = vmatpush2.msra.mxu0 0.0
        %1643 = vmatprep.subr.mxu0 0.0
        %1644 = vmatpush2.msra.mxu0 0.0
        %1645 = vmatprep.subr.mxu0 0.0
        %1646 = vmatpush2.msra.mxu0 0.0
        %1647 = vmatprep.subr.mxu0 0.0
        %1648 = vmatpush2.msra.mxu0 0.0
        %1649 = vmatprep.subr.mxu0 0.0
        %1650 = vmatpush2.msra.mxu0 0.0
        %1651 = vmatprep.mubr.f32.mxu0 0.0
        %1652 = vmatmul.mubr.f32.gmra.mxu0 %v1585
        %v1653 = vpop.f32.mrf.mxu0
        %v1654 = vadd.f32 0.0, %v1653
        %v1655 = vpop.f32.mrf.mxu0
        %v1656 = vadd.f32 0.0, %v1655
        %1657 = vdwg.mxu0
        %v1658 = vadd.f32 %v1576, %v1654
        %v1659 = vadd.f32 %v1577, %v1656
        %1660 = vrot.lane.b32.xlu0 %v1236, 127
        %v1661 = vpop.permute.xlu0 %1660
        %1662 = vrot.lane.b32.xlu0 %v1237, 127
        %v1663 = vpop.permute.xlu0 %1662
        %v1664 = vsel %vm808, %v1661, %v1663
        %v1665 = vsel %vm808, %v1663, %v1661
        %v1666 = vmul.f32 %v1664, %v817
        %v1667 = vmul.f32 %v1665, %v821
        %s1668 = scalar_lea.vmem %s3, 40
        %v1669 = vld [vmem:[%s1668] sm:$0xff]
        %v1671 = vsel %vm1257, %v1669, 0
        %1673 = vmatprep.subr.mxu0 0.0
        %1674 = vmatpush1.msra.mxu0 0.0
        %1675 = vmatprep.subr.mxu0 0.0
        %1676 = vmatpush1.msra.mxu0 0.0
        %1677 = vmatprep.subr.mxu0 0.0
        %1678 = vmatpush1.msra.mxu0 0.0
        %1679 = vmatprep.subr.mxu0 0.0
        %1680 = vmatpush1.msra.mxu0 0.0
        %1681 = vmatprep.subr.mxu0 0.0
        %1682 = vmatpush1.msra.mxu0 0.0
        %1683 = vmatprep.subr.mxu0 0.0
        %1684 = vmatpush1.msra.mxu0 0.0
        %1685 = vmatprep.subr.mxu0 0.0
        %1686 = vmatpush1.msra.mxu0 0.0
        %1687 = vmatprep.subr.mxu0 0.0
        %1688 = vmatpush1.msra.mxu0 0.0
        %1689 = vmatprep.subr.mxu0 0.0
        %1690 = vmatpush1.msra.mxu0 0.0
        %1691 = vmatprep.subr.mxu0 0.0
        %1692 = vmatpush1.msra.mxu0 0.0
        %1693 = vmatprep.subr.mxu0 0.0
        %1694 = vmatpush1.msra.mxu0 0.0
        %1695 = vmatprep.subr.mxu0 0.0
        %1696 = vmatpush1.msra.mxu0 0.0
        %1697 = vmatprep.subr.mxu0 0.0
        %1698 = vmatpush1.msra.mxu0 0.0
        %1699 = vmatprep.subr.mxu0 0.0
        %1700 = vmatpush1.msra.mxu0 0.0
        %1701 = vmatprep.subr.mxu0 0.0
        %1702 = vmatpush1.msra.mxu0 0.0
        %1703 = vmatprep.subr.mxu0 %v1667
        %1704 = vmatpush1.msra.mxu0 %v1666
        %1705 = vmatprep.subr.mxu0 0.0
        %1706 = vmatpush2.msra.mxu0 0.0
        %1707 = vmatprep.subr.mxu0 0.0
        %1708 = vmatpush2.msra.mxu0 0.0
        %1709 = vmatprep.subr.mxu0 0.0
        %1710 = vmatpush2.msra.mxu0 0.0
        %1711 = vmatprep.subr.mxu0 0.0
        %1712 = vmatpush2.msra.mxu0 0.0
        %1713 = vmatprep.subr.mxu0 0.0
        %1714 = vmatpush2.msra.mxu0 0.0
        %1715 = vmatprep.subr.mxu0 0.0
        %1716 = vmatpush2.msra.mxu0 0.0
        %1717 = vmatprep.subr.mxu0 0.0
        %1718 = vmatpush2.msra.mxu0 0.0
        %1719 = vmatprep.subr.mxu0 0.0
        %1720 = vmatpush2.msra.mxu0 0.0
        %1721 = vmatprep.subr.mxu0 0.0
        %1722 = vmatpush2.msra.mxu0 0.0
        %1723 = vmatprep.subr.mxu0 0.0
        %1724 = vmatpush2.msra.mxu0 0.0
        %1725 = vmatprep.subr.mxu0 0.0
        %1726 = vmatpush2.msra.mxu0 0.0
        %1727 = vmatprep.subr.mxu0 0.0
        %1728 = vmatpush2.msra.mxu0 0.0
        %1729 = vmatprep.subr.mxu0 0.0
        %1730 = vmatpush2.msra.mxu0 0.0
        %1731 = vmatprep.subr.mxu0 0.0
        %1732 = vmatpush2.msra.mxu0 0.0
        %1733 = vmatprep.subr.mxu0 0.0
        %1734 = vmatpush2.msra.mxu0 0.0
        %1735 = vmatprep.subr.mxu0 0.0
        %1736 = vmatpush2.msra.mxu0 0.0
        %1737 = vmatprep.mubr.f32.mxu0 0.0
        %1738 = vmatmul.mubr.f32.gmra.mxu0 %v1671
        %v1739 = vpop.f32.mrf.mxu0
        %v1740 = vadd.f32 0.0, %v1739
        %v1741 = vpop.f32.mrf.mxu0
        %v1742 = vadd.f32 0.0, %v1741
        %1743 = vdwg.mxu0
        %v1744 = vadd.f32 %v1658, %v1740
        %v1745 = vadd.f32 %v1659, %v1742
        %1746 = vrot.lane.b32.xlu0 %v1236, 113
        %v1747 = vpop.permute.xlu0 %1746
        %1748 = vrot.lane.b32.xlu0 %v1237, 113
        %v1749 = vpop.permute.xlu0 %1748
        %v1750 = vsel %vm914, %v1747, %v1749
        %v1751 = vsel %vm914, %v1749, %v1747
        %v1752 = vmul.f32 %v1750, %v923
        %v1753 = vmul.f32 %v1751, %v927
        %s1754 = scalar_lea.vmem %s3, 48
        %v1755 = vld [vmem:[%s1754] sm:$0xff]
        %v1757 = vsel %vm1257, %v1755, 0
        %1759 = vmatprep.subr.mxu0 0.0
        %1760 = vmatpush1.msra.mxu0 0.0
        %1761 = vmatprep.subr.mxu0 0.0
        %1762 = vmatpush1.msra.mxu0 0.0
        %1763 = vmatprep.subr.mxu0 0.0
        %1764 = vmatpush1.msra.mxu0 0.0
        %1765 = vmatprep.subr.mxu0 0.0
        %1766 = vmatpush1.msra.mxu0 0.0
        %1767 = vmatprep.subr.mxu0 0.0
        %1768 = vmatpush1.msra.mxu0 0.0
        %1769 = vmatprep.subr.mxu0 0.0
        %1770 = vmatpush1.msra.mxu0 0.0
        %1771 = vmatprep.subr.mxu0 0.0
        %1772 = vmatpush1.msra.mxu0 0.0
        %1773 = vmatprep.subr.mxu0 0.0
        %1774 = vmatpush1.msra.mxu0 0.0
        %1775 = vmatprep.subr.mxu0 0.0
        %1776 = vmatpush1.msra.mxu0 0.0
        %1777 = vmatprep.subr.mxu0 0.0
        %1778 = vmatpush1.msra.mxu0 0.0
        %1779 = vmatprep.subr.mxu0 0.0
        %1780 = vmatpush1.msra.mxu0 0.0
        %1781 = vmatprep.subr.mxu0 0.0
        %1782 = vmatpush1.msra.mxu0 0.0
        %1783 = vmatprep.subr.mxu0 0.0
        %1784 = vmatpush1.msra.mxu0 0.0
        %1785 = vmatprep.subr.mxu0 0.0
        %1786 = vmatpush1.msra.mxu0 0.0
        %1787 = vmatprep.subr.mxu0 0.0
        %1788 = vmatpush1.msra.mxu0 0.0
        %1789 = vmatprep.subr.mxu0 %v1753
        %1790 = vmatpush1.msra.mxu0 %v1752
        %1791 = vmatprep.subr.mxu0 0.0
        %1792 = vmatpush2.msra.mxu0 0.0
        %1793 = vmatprep.subr.mxu0 0.0
        %1794 = vmatpush2.msra.mxu0 0.0
        %1795 = vmatprep.subr.mxu0 0.0
        %1796 = vmatpush2.msra.mxu0 0.0
        %1797 = vmatprep.subr.mxu0 0.0
        %1798 = vmatpush2.msra.mxu0 0.0
        %1799 = vmatprep.subr.mxu0 0.0
        %1800 = vmatpush2.msra.mxu0 0.0
        %1801 = vmatprep.subr.mxu0 0.0
        %1802 = vmatpush2.msra.mxu0 0.0
        %1803 = vmatprep.subr.mxu0 0.0
        %1804 = vmatpush2.msra.mxu0 0.0
        %1805 = vmatprep.subr.mxu0 0.0
        %1806 = vmatpush2.msra.mxu0 0.0
        %1807 = vmatprep.subr.mxu0 0.0
        %1808 = vmatpush2.msra.mxu0 0.0
        %1809 = vmatprep.subr.mxu0 0.0
        %1810 = vmatpush2.msra.mxu0 0.0
        %1811 = vmatprep.subr.mxu0 0.0
        %1812 = vmatpush2.msra.mxu0 0.0
        %1813 = vmatprep.subr.mxu0 0.0
        %1814 = vmatpush2.msra.mxu0 0.0
        %1815 = vmatprep.subr.mxu0 0.0
        %1816 = vmatpush2.msra.mxu0 0.0
        %1817 = vmatprep.subr.mxu0 0.0
        %1818 = vmatpush2.msra.mxu0 0.0
        %1819 = vmatprep.subr.mxu0 0.0
        %1820 = vmatpush2.msra.mxu0 0.0
        %1821 = vmatprep.subr.mxu0 0.0
        %1822 = vmatpush2.msra.mxu0 0.0
        %1823 = vmatprep.mubr.f32.mxu0 0.0
        %1824 = vmatmul.mubr.f32.gmra.mxu0 %v1757
        %v1825 = vpop.f32.mrf.mxu0
        %v1826 = vadd.f32 0.0, %v1825
        %v1827 = vpop.f32.mrf.mxu0
        %v1828 = vadd.f32 0.0, %v1827
        %1829 = vdwg.mxu0
        %v1830 = vadd.f32 %v1744, %v1826
        %v1831 = vadd.f32 %v1745, %v1828
        %1832 = vrot.lane.b32.xlu0 %v1236, 112
        %v1833 = vpop.permute.xlu0 %1832
        %1834 = vrot.lane.b32.xlu0 %v1237, 112
        %v1835 = vpop.permute.xlu0 %1834
        %v1836 = vsel %vm1020, %v1833, %v1835
        %v1837 = vsel %vm1020, %v1835, %v1833
        %v1838 = vmul.f32 %v1836, %v1029
        %v1839 = vmul.f32 %v1837, %v1033
        %s1840 = scalar_lea.vmem %s3, 56
        %v1841 = vld [vmem:[%s1840] sm:$0xff]
        %v1843 = vsel %vm1257, %v1841, 0
        %1845 = vmatprep.subr.mxu0 0.0
        %1846 = vmatpush1.msra.mxu0 0.0
        %1847 = vmatprep.subr.mxu0 0.0
        %1848 = vmatpush1.msra.mxu0 0.0
        %1849 = vmatprep.subr.mxu0 0.0
        %1850 = vmatpush1.msra.mxu0 0.0
        %1851 = vmatprep.subr.mxu0 0.0
        %1852 = vmatpush1.msra.mxu0 0.0
        %1853 = vmatprep.subr.mxu0 0.0
        %1854 = vmatpush1.msra.mxu0 0.0
        %1855 = vmatprep.subr.mxu0 0.0
        %1856 = vmatpush1.msra.mxu0 0.0
        %1857 = vmatprep.subr.mxu0 0.0
        %1858 = vmatpush1.msra.mxu0 0.0
        %1859 = vmatprep.subr.mxu0 0.0
        %1860 = vmatpush1.msra.mxu0 0.0
        %1861 = vmatprep.subr.mxu0 0.0
        %1862 = vmatpush1.msra.mxu0 0.0
        %1863 = vmatprep.subr.mxu0 0.0
        %1864 = vmatpush1.msra.mxu0 0.0
        %1865 = vmatprep.subr.mxu0 0.0
        %1866 = vmatpush1.msra.mxu0 0.0
        %1867 = vmatprep.subr.mxu0 0.0
        %1868 = vmatpush1.msra.mxu0 0.0
        %1869 = vmatprep.subr.mxu0 0.0
        %1870 = vmatpush1.msra.mxu0 0.0
        %1871 = vmatprep.subr.mxu0 0.0
        %1872 = vmatpush1.msra.mxu0 0.0
        %1873 = vmatprep.subr.mxu0 0.0
        %1874 = vmatpush1.msra.mxu0 0.0
        %1875 = vmatprep.subr.mxu0 %v1839
        %1876 = vmatpush1.msra.mxu0 %v1838
        %1877 = vmatprep.subr.mxu0 0.0
        %1878 = vmatpush2.msra.mxu0 0.0
        %1879 = vmatprep.subr.mxu0 0.0
        %1880 = vmatpush2.msra.mxu0 0.0
        %1881 = vmatprep.subr.mxu0 0.0
        %1882 = vmatpush2.msra.mxu0 0.0
        %1883 = vmatprep.subr.mxu0 0.0
        %1884 = vmatpush2.msra.mxu0 0.0
        %1885 = vmatprep.subr.mxu0 0.0
        %1886 = vmatpush2.msra.mxu0 0.0
        %1887 = vmatprep.subr.mxu0 0.0
        %1888 = vmatpush2.msra.mxu0 0.0
        %1889 = vmatprep.subr.mxu0 0.0
        %1890 = vmatpush2.msra.mxu0 0.0
        %1891 = vmatprep.subr.mxu0 0.0
        %1892 = vmatpush2.msra.mxu0 0.0
        %1893 = vmatprep.subr.mxu0 0.0
        %1894 = vmatpush2.msra.mxu0 0.0
        %1895 = vmatprep.subr.mxu0 0.0
        %1896 = vmatpush2.msra.mxu0 0.0
        %1897 = vmatprep.subr.mxu0 0.0
        %1898 = vmatpush2.msra.mxu0 0.0
        %1899 = vmatprep.subr.mxu0 0.0
        %1900 = vmatpush2.msra.mxu0 0.0
        %1901 = vmatprep.subr.mxu0 0.0
        %1902 = vmatpush2.msra.mxu0 0.0
        %1903 = vmatprep.subr.mxu0 0.0
        %1904 = vmatpush2.msra.mxu0 0.0
        %1905 = vmatprep.subr.mxu0 0.0
        %1906 = vmatpush2.msra.mxu0 0.0
        %1907 = vmatprep.subr.mxu0 0.0
        %1908 = vmatpush2.msra.mxu0 0.0
        %1909 = vmatprep.mubr.f32.mxu0 0.0
        %1910 = vmatmul.mubr.f32.gmra.mxu0 %v1843
        %v1911 = vpop.f32.mrf.mxu0
        %v1912 = vadd.f32 0.0, %v1911
        %v1913 = vpop.f32.mrf.mxu0
        %v1914 = vadd.f32 0.0, %v1913
        %1915 = vdwg.mxu0
        %v1916 = vadd.f32 %v1830, %v1912
        %v1917 = vadd.f32 %v1831, %v1914
        %1918 = vrot.lane.b32.xlu0 %v1236, 111
        %v1919 = vpop.permute.xlu0 %1918
        %1920 = vrot.lane.b32.xlu0 %v1237, 111
        %v1921 = vpop.permute.xlu0 %1920
        %v1922 = vsel %vm1126, %v1919, %v1921
        %v1923 = vsel %vm1126, %v1921, %v1919
        %v1924 = vmul.f32 %v1922, %v1135
        %v1925 = vmul.f32 %v1923, %v1139
        %s1926 = scalar_lea.vmem %s3, 64
        %v1927 = vld [vmem:[%s1926] sm:$0xff]
        %v1929 = vsel %vm1257, %v1927, 0
        %1931 = vmatprep.subr.mxu0 0.0
        %1932 = vmatpush1.msra.mxu0 0.0
        %1933 = vmatprep.subr.mxu0 0.0
        %1934 = vmatpush1.msra.mxu0 0.0
        %1935 = vmatprep.subr.mxu0 0.0
        %1936 = vmatpush1.msra.mxu0 0.0
        %1937 = vmatprep.subr.mxu0 0.0
        %1938 = vmatpush1.msra.mxu0 0.0
        %1939 = vmatprep.subr.mxu0 0.0
        %1940 = vmatpush1.msra.mxu0 0.0
        %1941 = vmatprep.subr.mxu0 0.0
        %1942 = vmatpush1.msra.mxu0 0.0
        %1943 = vmatprep.subr.mxu0 0.0
        %1944 = vmatpush1.msra.mxu0 0.0
        %1945 = vmatprep.subr.mxu0 0.0
        %1946 = vmatpush1.msra.mxu0 0.0
        %1947 = vmatprep.subr.mxu0 0.0
        %1948 = vmatpush1.msra.mxu0 0.0
        %1949 = vmatprep.subr.mxu0 0.0
        %1950 = vmatpush1.msra.mxu0 0.0
        %1951 = vmatprep.subr.mxu0 0.0
        %1952 = vmatpush1.msra.mxu0 0.0
        %1953 = vmatprep.subr.mxu0 0.0
        %1954 = vmatpush1.msra.mxu0 0.0
        %1955 = vmatprep.subr.mxu0 0.0
        %1956 = vmatpush1.msra.mxu0 0.0
        %1957 = vmatprep.subr.mxu0 0.0
        %1958 = vmatpush1.msra.mxu0 0.0
        %1959 = vmatprep.subr.mxu0 0.0
        %1960 = vmatpush1.msra.mxu0 0.0
        %1961 = vmatprep.subr.mxu0 %v1925
        %1962 = vmatpush1.msra.mxu0 %v1924
        %1963 = vmatprep.subr.mxu0 0.0
        %1964 = vmatpush2.msra.mxu0 0.0
        %1965 = vmatprep.subr.mxu0 0.0
        %1966 = vmatpush2.msra.mxu0 0.0
        %1967 = vmatprep.subr.mxu0 0.0
        %1968 = vmatpush2.msra.mxu0 0.0
        %1969 = vmatprep.subr.mxu0 0.0
        %1970 = vmatpush2.msra.mxu0 0.0
        %1971 = vmatprep.subr.mxu0 0.0
        %1972 = vmatpush2.msra.mxu0 0.0
        %1973 = vmatprep.subr.mxu0 0.0
        %1974 = vmatpush2.msra.mxu0 0.0
        %1975 = vmatprep.subr.mxu0 0.0
        %1976 = vmatpush2.msra.mxu0 0.0
        %1977 = vmatprep.subr.mxu0 0.0
        %1978 = vmatpush2.msra.mxu0 0.0
        %1979 = vmatprep.subr.mxu0 0.0
        %1980 = vmatpush2.msra.mxu0 0.0
        %1981 = vmatprep.subr.mxu0 0.0
        %1982 = vmatpush2.msra.mxu0 0.0
        %1983 = vmatprep.subr.mxu0 0.0
        %1984 = vmatpush2.msra.mxu0 0.0
        %1985 = vmatprep.subr.mxu0 0.0
        %1986 = vmatpush2.msra.mxu0 0.0
        %1987 = vmatprep.subr.mxu0 0.0
        %1988 = vmatpush2.msra.mxu0 0.0
        %1989 = vmatprep.subr.mxu0 0.0
        %1990 = vmatpush2.msra.mxu0 0.0
        %1991 = vmatprep.subr.mxu0 0.0
        %1992 = vmatpush2.msra.mxu0 0.0
        %1993 = vmatprep.subr.mxu0 0.0
        %1994 = vmatpush2.msra.mxu0 0.0
        %1995 = vmatprep.mubr.f32.mxu0 0.0
        %1996 = vmatmul.mubr.f32.gmra.mxu0 %v1929
        %v1997 = vpop.f32.mrf.mxu0
        %v1998 = vadd.f32 0.0, %v1997
        %v1999 = vpop.f32.mrf.mxu0
        %v2000 = vadd.f32 0.0, %v1999
        %2001 = vdwg.mxu0
        %v2002 = vadd.f32 %v1916, %v1998
        %v2003 = vadd.f32 %v1917, %v2000
        %v2004 = vld [vmem:[%s4] sm:$0xff]
        %2006 = vset.pattern.permute.xlu0 0
        %2007 = vperm.xlu0 %2006, %v2004
        %v2008 = vpop.permute.xlu0 %2007
        %v2010 = vadd.f32 %v2002, %v2008
        %v2011 = vadd.f32 %v2003, %v2008
        %v2012 = vmax.f32 %v2010, 0.0
        %v2013 = vmax.f32 %v2011, 0.0
        %2014 = vst [vmem:[%s279] sm:$0xff] %v2012
        %2015 = vst [vmem:[%s279 + $0x8] sm:$0xff] %v2013
        %p2016 = scmp.lt.s32.totalorder %s19, 1
        %s2017 = scalar_select %p2016, %s19, 1
        %s2018 = smul.addr %s2017, 2
        %s2019 = smul.addr %s2018, 8
        %s2020 = scalar_lea.vmem %s6, %s2019
        // Predicated region
        $region53: #{base_conv_forward.1} parent=43 // pred_check
          %p2021 = pneg %p168
        $region54: #{base_conv_forward.1} parent=43 // pred_check_branch
          %2023 = sbr.rel (%p2021) target = $region56
        $region55: #{base_conv_forward.1} parent=43 // pred_region
          _
        $region56: #{base_conv_forward.1} parent=43 // pred_fallthru
          _
      $region44: #{base_conv_forward.1} parent=5 // pred_fallthru
        _
      %p2024 = scmp.le.s32.totalorder 2, %s14
      // Predicated region
      $region57: #{base_conv_forward.1} parent=5 // pred_check
        %p2025 = pneg %p2024
      $region58: #{base_conv_forward.1} parent=5 // pred_check_branch
        %2027 = sbr.rel (%p2025) target = $region60
      $region59: #{base_conv_forward.1} parent=5 // pred_region
        %s2028 = ssub.s32 %s14, 2
        // Predicated region
        $region61: #{base_conv_forward.1} parent=59 // pred_check
          %p2029 = pneg %p174
        $region62: #{base_conv_forward.1} parent=59 // pred_check_branch
          %2031 = sbr.rel (%p2029) target = $region64
        $region63: #{base_conv_forward.1} parent=59 // pred_region
          %p2032 = scmp.lt.s32.totalorder %s20, 1
          %s2033 = scalar_select %p2032, %s20, 1
          %s2034 = smul.addr %s2033, 2
          %s2035 = smul.addr %s2034, 8
          %s2036 = scalar_lea.vmem %s6, %s2035
        $region64: #{base_conv_forward.1} parent=59 // pred_fallthru
          _
      $region60: #{base_conv_forward.1} parent=5 // pred_fallthru
        _
    $region6: #{base_conv_forward.1} parent=1 // loop_footer
      %s18 = sadd.s32 1, %s14
    $region7: #{base_conv_forward.1} parent=1 // loop_footer_branch
      %13 = sbr.rel target = $region3
    $region8: #{base_conv_forward.1} parent=1 // loop_exit
      _
    %2037 = vsyncpa [#allocation3], 1
    %s2038 = scalar_lea.sflag [#allocation3], 1
    %2039 = vsyncpa %s2038, 1
    %2040 = vsyncpa [#allocation5], 1

</llo_original>
